<compile_context>
chip_gen: v6e
topology: v6e:2x2x1
jax: 0.10.0
libtpu: 0.0.40
codegen_flags: <defaults>
</compile_context>

<pallas_src>
import functools

import jax
import jax.numpy as jnp
from jax.experimental import pallas as pl
from jax.experimental.pallas import tpu as pltpu

BN_EPS = 1e-5

# VMEM budgets (bytes).  Conservative against v7x (64 MiB physical VMEM per TC).
_RESIDENT_BUDGET = 40 * 1024 * 1024   # max estimated live bytes for the single-step path
_TILE_BUDGET = 24 * 1024 * 1024       # per-grid-step working-set target for the streamed path
_VMEM_LIMIT = 48 * 1024 * 1024        # scoped VMEM limit handed to Mosaic


def _round_up(v, m):
    return ((v + m - 1) // m) * m


# --------------------------------------------------------------------------------------
# Path 1: x fully VMEM-resident, single fused step (x read from HBM exactly once).
# --------------------------------------------------------------------------------------
def ffnn_resident_kernel(x_ref, w1_ref, gamma_ref, beta_ref, w2_ref, b2_ref,
                         w3_ref, b3_ref, out_ref):
    # Linear(input_dim, 64). b1 omitted: cancels exactly under train-mode BatchNorm.
    h1 = jnp.dot(x_ref[...], w1_ref[...], preferred_element_type=jnp.float32)   # [B, H1]
    # Train-mode BatchNorm with exact (centered) batch statistics.
    mean = jnp.mean(h1, axis=0, keepdims=True)
    centered = h1 - mean
    var = jnp.mean(centered * centered, axis=0, keepdims=True)                  # biased variance
    scale = gamma_ref[...] * jax.lax.rsqrt(var + BN_EPS)                        # rsqrt -> EUP slot
    h1r = jnp.maximum(centered * scale + beta_ref[...], 0.0)
    # Linear(64, 32) + ReLU.
    h2r = jnp.maximum(
        jnp.dot(h1r, w2_ref[...], preferred_element_type=jnp.float32) + b2_ref[...], 0.0)
    # Linear(32, 1): VPU broadcast-mul + cross-lane reduce, lane-dense [1, B] store.
    y = jnp.sum(h2r * w3_ref[...], axis=-1)
    out_ref[...] = y[None, :] + b3_ref[...]


# --------------------------------------------------------------------------------------
# Path 2: streamed two-pass, batch-tiled kernel (only when x does not fit in VMEM).
# --------------------------------------------------------------------------------------
def ffnn_streamed_kernel(x_ref, w1_ref, gamma_ref, beta_ref, w2_ref, b2_ref,
                         w3_ref, b3_ref, out_ref,
                         sum_ref, sumsq_ref, scale_ref, shift_ref,
                         *, n_valid, tile_b, needs_mask):
    """grid axis 0 (p): 0 = accumulate BN batch statistics, 1 = normalize + MLP tail.
    grid axis 1 (i): batch tile index (fastest-varying)."""
    p = pl.program_id(0)
    i = pl.program_id(1)

    @pl.when(jnp.logical_and(p == 0, i == 0))
    def _init():
        sum_ref[...] = jnp.zeros_like(sum_ref)
        sumsq_ref[...] = jnp.zeros_like(sumsq_ref)
        # Guard: the out block index is frozen at 0 for the whole stats pass and is
        # only written back after pass 1 fills it; zero it anyway so a future grid
        # reordering can never leak uninitialized VMEM to HBM.
        out_ref[...] = jnp.zeros_like(out_ref)

    # Linear(input_dim, 64); b1 elided (cancels exactly under train-mode BatchNorm).
    h1 = jnp.dot(x_ref[...], w1_ref[...], preferred_element_type=jnp.float32)   # [T, H1]

    @pl.when(p == 0)
    def _accumulate():
        if needs_mask:
            # Ragged last tile handled in-kernel (no host-side jnp.pad copy of x):
            # out-of-bounds rows of the boundary block hold unspecified data, so
            # mask them out of the batch statistics.
            row = i * tile_b + jax.lax.broadcasted_iota(jnp.int32, (tile_b, 1), 0)
            h1m = jnp.where(row < n_valid, h1, 0.0)
        else:
            h1m = h1
        sum_ref[...] += jnp.sum(h1m, axis=0, keepdims=True)
        sumsq_ref[...] += jnp.sum(h1m * h1m, axis=0, keepdims=True)

    @pl.when(jnp.logical_and(p == 1, i == 0))
    def _finalize():
        inv_n = jnp.float32(1.0 / n_valid)
        mean = sum_ref[...] * inv_n
        # Clamp: E[x^2] - E[x]^2 can go slightly negative from f32 cancellation.
        var = jnp.maximum(sumsq_ref[...] * inv_n - mean * mean, 0.0)
        scale = gamma_ref[...] * jax.lax.rsqrt(var + BN_EPS)
        scale_ref[...] = scale
        shift_ref[...] = beta_ref[...] - mean * scale

    @pl.when(p == 1)
    def _compute():
        # BatchNorm folded into one FMA, then ReLU -> Linear -> ReLU -> Linear.
        h1r = jnp.maximum(h1 * scale_ref[...] + shift_ref[...], 0.0)
        h2 = jnp.dot(h1r, w2_ref[...], preferred_element_type=jnp.float32) + b2_ref[...]
        h2r = jnp.maximum(h2, 0.0)
        y = jnp.sum(h2r * w3_ref[...], axis=-1)           # [T]
        out_ref[...] = y[None, :] + b3_ref[...]           # lane-dense [1, T]


def feedforward_nn(x, params, *, tile_b=None, force_tiled=False):
    w1, b1, gamma, beta, w2, b2, w3, b3 = params
    del b1  # cancels under train-mode BatchNorm; kept in params only for PyTorch parity
    B, D = x.shape
    H1 = w1.shape[1]
    H2 = w2.shape[1]
    w3_row = w3.reshape(1, H2)          # [1, 32] row for broadcast-mul in the kernel
    b3_s = b3.reshape(1, 1)

    # ---------------- Path 1: x (plus intermediates) fits in VMEM -> single step ----------------
    resident_bytes = 4 * B * (D + 2 * H1 + H2 + 1)
    if (not force_tiled) and resident_bytes <= _RESIDENT_BUDGET:
        out = pl.pallas_call(
            ffnn_resident_kernel,
            out_shape=jax.ShapeDtypeStruct((1, B), jnp.float32),
            compiler_params=pltpu.CompilerParams(vmem_limit_bytes=_VMEM_LIMIT),
        )(x, w1, gamma, beta, w2, b2, w3_row, b3_s)
        return out[0, :].reshape(B, 1)

    # ---------------- Path 2: streamed two-pass tiled kernel ----------------
    if tile_b is None:
        # Per-step working set: double-buffered x tile + h1/h1r/h2 f32 temporaries.
        bytes_per_row = 4 * (2 * D + 3 * H1 + H2 + 2)
        tile_b = max(128, min(8192, (_TILE_BUDGET // bytes_per_row) // 128 * 128))
    if tile_b >= B:
        tile_b = B                       # single tile: full-dim blocks, no divisibility needed
    else:
        tile_b = max(128, (tile_b // 128) * 128)   # lane-dense out blocks need /128
        if tile_b >= B:
            tile_b = B
    num_tiles = -(-B // tile_b)
    needs_mask = (B % tile_b) != 0       # ragged last tile handled in-kernel, no jnp.pad copy

    kernel = functools.partial(
        ffnn_streamed_kernel, n_valid=B, tile_b=tile_b, needs_mask=needs_mask)

    const = lambda p, i: (0, 0)          # weights / BN params stay VMEM-resident
    out = pl.pallas_call(
        kernel,
        out_shape=jax.ShapeDtypeStruct((1, B), jnp.float32),
        grid_spec=pltpu.PrefetchScalarGridSpec(
            num_scalar_prefetch=0,
            grid=(2, num_tiles),         # (pass, batch tile); last axis fastest
            in_specs=[
                pl.BlockSpec((tile_b, D), lambda p, i: (i, 0)),   # x streamed per tile
                pl.BlockSpec((D, H1), const),                     # w1
                pl.BlockSpec((1, H1), const),                     # gamma
                pl.BlockSpec((1, H1), const),                     # beta
                pl.BlockSpec((H1, H2), const),                    # w2
                pl.BlockSpec((1, H2), const),                     # b2
                pl.BlockSpec((1, H2), const),                     # w3 (row)
                pl.BlockSpec((1, 1), const),                      # b3
            ],
            # Lane-dense output; block index is frozen at 0 during the stats pass
            # (p == 0) so nothing real is written back until pass 1 produces data
            # (and the block is zero-initialized as a guard).
            out_specs=pl.BlockSpec((1, tile_b), lambda p, i: (0, i * p)),
            scratch_shapes=[
                pltpu.VMEM((1, H1), jnp.float32),   # per-column sum of h1
                pltpu.VMEM((1, H1), jnp.float32),   # per-column sum of h1^2
                pltpu.VMEM((1, H1), jnp.float32),   # folded BN scale
                pltpu.VMEM((1, H1), jnp.float32),   # folded BN shift
            ],
        ),
        compiler_params=pltpu.CompilerParams(
            # TODO(synk): per-core partial BN sums would let the tile axis be
            # parallel across v7x's 2 TensorCores; with shared stats scratch it
            # must stay "arbitrary" (sequential) for correctness.
            dimension_semantics=("arbitrary", "arbitrary"),
            vmem_limit_bytes=_VMEM_LIMIT,
        ),
    )(x, w1, gamma, beta, w2, b2, w3_row, b3_s)

    return out[0, :].reshape(B, 1)


def init_params(key, input_dim):
    """Deterministic init mimicking PyTorch Linear default (uniform +/- 1/sqrt(fan_in))."""
    def linear_init(k, fan_in, fan_out):
        k_w, k_b = jax.random.split(k)
        bound = 1.0 / jnp.sqrt(jnp.float32(fan_in))
        # stored as [fan_in, fan_out] (transposed vs. PyTorch's [out, in])
        w = jax.random.uniform(k_w, (fan_in, fan_out), jnp.float32, -bound, bound)
        b = jax.random.uniform(k_b, (1, fan_out), jnp.float32, -bound, bound)
        return w, b

    k1, k2, k3 = jax.random.split(key, 3)
    w1, b1 = linear_init(k1, input_dim, 64)
    w2, b2 = linear_init(k2, 64, 32)
    w3, b3 = linear_init(k3, 32, 1)
    gamma = jnp.ones((1, 64), jnp.float32)   # BatchNorm1d weight
    beta = jnp.zeros((1, 64), jnp.float32)   # BatchNorm1d bias
    return (w1, b1, gamma, beta, w2, b2, w3, b3)


def reference(x, params):
    """Pure-JAX reference of the same forward pass (train-mode BatchNorm, b1 included)."""
    w1, b1, gamma, beta, w2, b2, w3, b3 = params
    h1 = x @ w1 + b1
    mean = jnp.mean(h1, axis=0, keepdims=True)
    var = jnp.mean((h1 - mean) ** 2, axis=0, keepdims=True)
    h1 = (h1 - mean) / jnp.sqrt(var + BN_EPS) * gamma + beta
    h1 = jnp.maximum(h1, 0.0)
    h2 = jnp.maximum(h1 @ w2 + b2, 0.0)
    return h2 @ w3 + b3


if __name__ == "__main__":
    # Small shapes consistent with the module (input_dim=32, hidden 64/32/1, batch=200).
    B, INPUT_DIM = 200, 32
    key = jax.random.PRNGKey(0)
    k_x, k_p = jax.random.split(key)
    x = jax.random.normal(k_x, (B, INPUT_DIM), jnp.float32)
    params = init_params(k_p, INPUT_DIM)

    ref = reference(x, params)

    # Path 1 (default for small/medium B): x fully VMEM-resident, single fused step.
    out_resident = jax.block_until_ready(feedforward_nn(x, params))
    assert out_resident.shape == (B, 1), out_resident.shape
    assert jnp.allclose(out_resident, ref, atol=1e-4, rtol=1e-4), \
        float(jnp.max(jnp.abs(out_resident - ref)))

    # Path 2 (large-B path) forced at a small tile: exercises multi-tile streaming,
    # global BatchNorm stats accumulation, and the ragged last tile with no host pad.
    out_tiled = jax.block_until_ready(feedforward_nn(x, params, force_tiled=True, tile_b=128))
    assert out_tiled.shape == (B, 1), out_tiled.shape
    assert jnp.allclose(out_tiled, ref, atol=1e-4, rtol=1e-4), \
        float(jnp.max(jnp.abs(out_tiled - ref)))

    print("KERNEL_OK")
</pallas_src>

<mosaic_0001>
module attributes {stable_mosaic.version = 11 : i64} {
  func.func @ffnn_resident_kernel(%arg0: memref<200x32xf32, #tpu.memory_space<vmem>>, %arg1: memref<32x64xf32, #tpu.memory_space<vmem>>, %arg2: memref<1x64xf32, #tpu.memory_space<vmem>>, %arg3: memref<1x64xf32, #tpu.memory_space<vmem>>, %arg4: memref<64x32xf32, #tpu.memory_space<vmem>>, %arg5: memref<1x32xf32, #tpu.memory_space<vmem>>, %arg6: memref<1x32xf32, #tpu.memory_space<vmem>>, %arg7: memref<1x1xf32, #tpu.memory_space<vmem>>, %arg8: memref<1x200xf32, #tpu.memory_space<vmem>>) attributes {dimension_semantics = [], scalar_prefetch = 0 : i64, scratch_operands = 0 : i64, tpu.core_type = #tpu.core_type<tc>} {
    %c0 = arith.constant 0 : index
    %c0_0 = arith.constant 0 : index
    %0 = vector.load %arg0[%c0, %c0_0] : memref<200x32xf32, #tpu.memory_space<vmem>>, vector<200x32xf32>
    %c0_1 = arith.constant 0 : index
    %c0_2 = arith.constant 0 : index
    %1 = vector.load %arg1[%c0_1, %c0_2] : memref<32x64xf32, #tpu.memory_space<vmem>>, vector<32x64xf32>
    %cst = arith.constant dense<0.000000e+00> : vector<200x64xf32>
    %2 = tpu.matmul %0, %1, %cst {dimension_numbers = #tpu.dot_dimension_numbers<[1], [0], [0], [1], [0, 0, 1, 1], [], []>} : vector<200x32xf32>, vector<32x64xf32>, vector<200x64xf32> -> vector<200x64xf32>
    %cst_3 = arith.constant dense<0.000000e+00> : vector<64xf32>
    %3 = vector.multi_reduction <add>, %2, %cst_3 [0] : vector<200x64xf32> to vector<64xf32>
    %4 = vector.shape_cast %3 : vector<64xf32> to vector<1x64xf32>
    %cst_4 = arith.constant 2.000000e+02 : f32
    %5 = vector.broadcast %cst_4 : f32 to vector<1x64xf32>
    %6 = arith.divf %4, %5 : vector<1x64xf32>
    %7 = vector.broadcast %6 : vector<1x64xf32> to vector<200x64xf32>
    %8 = arith.subf %2, %7 : vector<200x64xf32>
    %9 = arith.mulf %8, %8 : vector<200x64xf32>
    %cst_5 = arith.constant dense<0.000000e+00> : vector<64xf32>
    %10 = vector.multi_reduction <add>, %9, %cst_5 [0] : vector<200x64xf32> to vector<64xf32>
    %11 = vector.shape_cast %10 : vector<64xf32> to vector<1x64xf32>
    %cst_6 = arith.constant 2.000000e+02 : f32
    %12 = vector.broadcast %cst_6 : f32 to vector<1x64xf32>
    %13 = arith.divf %11, %12 : vector<1x64xf32>
    %c0_7 = arith.constant 0 : index
    %c0_8 = arith.constant 0 : index
    %14 = vector.load %arg2[%c0_7, %c0_8] : memref<1x64xf32, #tpu.memory_space<vmem>>, vector<1x64xf32>
    %cst_9 = arith.constant 9.99999974E-6 : f32
    %15 = vector.broadcast %cst_9 : f32 to vector<1x64xf32>
    %16 = arith.addf %13, %15 : vector<1x64xf32>
    %17 = math.rsqrt %16 : vector<1x64xf32>
    %18 = arith.mulf %14, %17 : vector<1x64xf32>
    %19 = vector.broadcast %18 : vector<1x64xf32> to vector<200x64xf32>
    %20 = arith.mulf %8, %19 : vector<200x64xf32>
    %c0_10 = arith.constant 0 : index
    %c0_11 = arith.constant 0 : index
    %21 = vector.load %arg3[%c0_10, %c0_11] : memref<1x64xf32, #tpu.memory_space<vmem>>, vector<1x64xf32>
    %22 = vector.broadcast %21 : vector<1x64xf32> to vector<200x64xf32>
    %23 = arith.addf %20, %22 : vector<200x64xf32>
    %cst_12 = arith.constant 0.000000e+00 : f32
    %24 = vector.broadcast %cst_12 : f32 to vector<200x64xf32>
    %25 = arith.maximumf %23, %24 : vector<200x64xf32>
    %c0_13 = arith.constant 0 : index
    %c0_14 = arith.constant 0 : index
    %26 = vector.load %arg4[%c0_13, %c0_14] : memref<64x32xf32, #tpu.memory_space<vmem>>, vector<64x32xf32>
    %cst_15 = arith.constant dense<0.000000e+00> : vector<200x32xf32>
    %27 = tpu.matmul %25, %26, %cst_15 {dimension_numbers = #tpu.dot_dimension_numbers<[1], [0], [0], [1], [0, 0, 1, 1], [], []>} : vector<200x64xf32>, vector<64x32xf32>, vector<200x32xf32> -> vector<200x32xf32>
    %c0_16 = arith.constant 0 : index
    %c0_17 = arith.constant 0 : index
    %28 = vector.load %arg5[%c0_16, %c0_17] : memref<1x32xf32, #tpu.memory_space<vmem>>, vector<1x32xf32>
    %29 = vector.broadcast %28 : vector<1x32xf32> to vector<200x32xf32>
    %30 = arith.addf %27, %29 : vector<200x32xf32>
    %cst_18 = arith.constant 0.000000e+00 : f32
    %31 = vector.broadcast %cst_18 : f32 to vector<200x32xf32>
    %32 = arith.maximumf %30, %31 : vector<200x32xf32>
    %c0_19 = arith.constant 0 : index
    %c0_20 = arith.constant 0 : index
    %33 = vector.load %arg6[%c0_19, %c0_20] : memref<1x32xf32, #tpu.memory_space<vmem>>, vector<1x32xf32>
    %34 = vector.broadcast %33 : vector<1x32xf32> to vector<200x32xf32>
    %35 = arith.mulf %32, %34 : vector<200x32xf32>
    %cst_21 = arith.constant dense<0.000000e+00> : vector<200xf32>
    %36 = vector.multi_reduction <add>, %35, %cst_21 [1] : vector<200x32xf32> to vector<200xf32>
    %37 = vector.shape_cast %36 : vector<200xf32> to vector<1x200xf32>
    %c0_22 = arith.constant 0 : index
    %c0_23 = arith.constant 0 : index
    %38 = vector.load %arg7[%c0_22, %c0_23] : memref<1x1xf32, #tpu.memory_space<vmem>>, vector<1x1xf32>
    %39 = vector.broadcast %38 : vector<1x1xf32> to vector<1x200xf32>
    %40 = arith.addf %37, %39 : vector<1x200xf32>
    %c0_24 = arith.constant 0 : index
    %c0_25 = arith.constant 0 : index
    %41 = vector.load %arg8[%c0_24, %c0_25] : memref<1x200xf32, #tpu.memory_space<vmem>>, vector<1x200xf32>
    tpu.vector_store %arg8[%c0_24, %c0_25], %40 {strides = array<i32>} : memref<1x200xf32, #tpu.memory_space<vmem>>, vector<1x200xf32>,
    return
  }
}

</mosaic_0001>

<llo_original>
// kernel: tpu_custom_call.1
$region0: #{tpu_custom_call.1}
  #allocation0 [shape = 'u32[]', space=smem, size = 0x4, offset = 0x4, fixed_abs, tag = 'smem constant byte address 0x4 - core index']
  #allocation1 [shape = 'u32[144,128]{1,0:T(1,128)}', space=vmem, size = 0x12000, scoped, tag = 'internal scratch']
  #allocation2 [shape = 'f32[1,1]{1,0:T(1,128)S(1)}', space=vmem, size = 0x200, scoped, tag = 'scoped memory for tpu_custom_call.1']
  %s0 = inlined_call_operand.vmem [shape: f32[200,32], index: 0, kind: input, shape index: {}]
  %s1 = inlined_call_operand.vmem [shape: f32[32,64], index: 1, kind: input, shape index: {}]
  %s2 = inlined_call_operand.vmem [shape: f32[1,64], index: 2, kind: input, shape index: {}]
  %s3 = inlined_call_operand.vmem [shape: f32[1,64], index: 3, kind: input, shape index: {}]
  %s4 = inlined_call_operand.vmem [shape: f32[64,32], index: 4, kind: input, shape index: {}]
  %s5 = inlined_call_operand.vmem [shape: f32[1,32], index: 5, kind: input, shape index: {}]
  %s6 = inlined_call_operand.vmem [shape: f32[1,32], index: 6, kind: input, shape index: {}]
  %s7 = inlined_call_operand.<no memory space> [shape: f32[1,1], index: 7, kind: input, shape index: {}]
  %s8 = inlined_call_operand.hbm [shape: f32[1,200], index: 8, kind: output, shape index: {}]
  %s9 = sld [smem:[#allocation0]]
  $region42: #{tpu_custom_call.1} parent=0
    _
  %s11 = ssub.s32 1, %s9
  %s12 = scalar_select 0, %s11, %s9
  %v13 = vstv %s7
  %14 = vst [vmem:[#allocation2] sm:$0x1] %v13
  $region1: #{tpu_custom_call.1} parent=0
    #allocation3 [shape = 'u8[1024]{0}', space=vmem, size = 0x400, scoped, tag = 'output window, operand 0, single buffered']
    #allocation4 [shape = 's32[1]{0}', space=sflag, size = 0x4, scoped, tag = 'scoped memory for tpu_custom_call.1']
    %15 = vsyncpa [#allocation4], 0
    // Predicated region
    $region2: #{tpu_custom_call.1} parent=1 // pred_check
      _
    $region3: #{tpu_custom_call.1} parent=1 // pred_check_branch
      %17 = sbr.rel (0) target = $region5
    $region4: #{tpu_custom_call.1} parent=1 // pred_region
      _
    $region5: #{tpu_custom_call.1} parent=1 // pred_fallthru
      _
    // Predicated region
    $region6: #{tpu_custom_call.1} parent=1 // pred_check
      _
    $region7: #{tpu_custom_call.1} parent=1 // pred_check_branch
      %19 = sbr.rel (0) target = $region9
    $region8: #{tpu_custom_call.1} parent=1 // pred_region
      _
    $region9: #{tpu_custom_call.1} parent=1 // pred_fallthru
      _
    // Predicated region
    $region10: #{tpu_custom_call.1} parent=1 // pred_check
      _
    $region11: #{tpu_custom_call.1} parent=1 // pred_check_branch
      %21 = sbr.rel (0) target = $region13
    $region12: #{tpu_custom_call.1} parent=1 // pred_region
      _
    $region13: #{tpu_custom_call.1} parent=1 // pred_fallthru
      _
    // Predicated region
    $region14: #{tpu_custom_call.1} parent=1 // pred_check
      _
    $region15: #{tpu_custom_call.1} parent=1 // pred_check_branch
      %23 = sbr.rel (0) target = $region17
    $region16: #{tpu_custom_call.1} parent=1 // pred_region
      _
    $region17: #{tpu_custom_call.1} parent=1 // pred_fallthru
      _
    // Predicated region
    $region18: #{tpu_custom_call.1} parent=1 // pred_check
      _
    $region19: #{tpu_custom_call.1} parent=1 // pred_check_branch
      %25 = sbr.rel (0) target = $region21
    $region20: #{tpu_custom_call.1} parent=1 // pred_region
      _
    $region21: #{tpu_custom_call.1} parent=1 // pred_fallthru
      _
    // Predicated region
    $region22: #{tpu_custom_call.1} parent=1 // pred_check
      _
    $region23: #{tpu_custom_call.1} parent=1 // pred_check_branch
      %27 = sbr.rel (0) target = $region25
    $region24: #{tpu_custom_call.1} parent=1 // pred_region
      _
    $region25: #{tpu_custom_call.1} parent=1 // pred_fallthru
      _
    // Predicated region
    $region26: #{tpu_custom_call.1} parent=1 // pred_check
      _
    $region27: #{tpu_custom_call.1} parent=1 // pred_check_branch
      %29 = sbr.rel (0) target = $region29
    $region28: #{tpu_custom_call.1} parent=1 // pred_region
      _
    $region29: #{tpu_custom_call.1} parent=1 // pred_fallthru
      _
    // Predicated region
    $region30: #{tpu_custom_call.1} parent=1 // pred_check
      _
    $region31: #{tpu_custom_call.1} parent=1 // pred_check_branch
      %31 = sbr.rel (0) target = $region33
    $region32: #{tpu_custom_call.1} parent=1 // pred_region
      _
    $region33: #{tpu_custom_call.1} parent=1 // pred_fallthru
      _
    %v32 = vld [vmem:[%s0] sm:$0xff]
    %v33 = vld [vmem:[%s0 + $0x8] sm:$0xff]
    %v34 = vld [vmem:[%s0 + $0x10] sm:$0xff]
    %v35 = vld [vmem:[%s0 + $0x18] sm:$0xff]
    %v36 = vld [vmem:[%s0 + $0x20] sm:$0xff]
    %v37 = vld [vmem:[%s0 + $0x28] sm:$0xff]
    %v38 = vld [vmem:[%s0 + $0x30] sm:$0xff]
    %v39 = vld [vmem:[%s0 + $0x38] sm:$0xff]
    %v40 = vld [vmem:[%s0 + $0x40] sm:$0xff]
    %v41 = vld [vmem:[%s0 + $0x48] sm:$0xff]
    %v42 = vld [vmem:[%s0 + $0x50] sm:$0xff]
    %v43 = vld [vmem:[%s0 + $0x58] sm:$0xff]
    %v44 = vld [vmem:[%s0 + $0x60] sm:$0xff]
    %v45 = vld [vmem:[%s0 + $0x68] sm:$0xff]
    %v46 = vld [vmem:[%s0 + $0x70] sm:$0xff]
    %v47 = vld [vmem:[%s0 + $0x78] sm:$0xff]
    %v48 = vld [vmem:[%s0 + $0x80] sm:$0xff]
    %v49 = vld [vmem:[%s0 + $0x88] sm:$0xff]
    %v50 = vld [vmem:[%s0 + $0x90] sm:$0xff]
    %v51 = vld [vmem:[%s0 + $0x98] sm:$0xff]
    %v52 = vld [vmem:[%s0 + $0xa0] sm:$0xff]
    %v53 = vld [vmem:[%s0 + $0xa8] sm:$0xff]
    %v54 = vld [vmem:[%s0 + $0xb0] sm:$0xff]
    %v55 = vld [vmem:[%s0 + $0xb8] sm:$0xff]
    %v56 = vld [vmem:[%s0 + $0xc0] sm:$0xff]
    %v57 = vld [vmem:[%s1] sm:$0xff]
    %v58 = vld [vmem:[%s1 + $0x8] sm:$0xff]
    %v59 = vld [vmem:[%s1 + $0x10] sm:$0xff]
    %v60 = vld [vmem:[%s1 + $0x18] sm:$0xff]
    %vm61 = vcmask 261120
    %v63 = vsel %vm61, %v32, 0
    %v66 = vsel %vm61, %v33, 0
    %v69 = vsel %vm61, %v34, 0
    %v72 = vsel %vm61, %v35, 0
    %v75 = vsel %vm61, %v36, 0
    %v78 = vsel %vm61, %v37, 0
    %v81 = vsel %vm61, %v38, 0
    %v84 = vsel %vm61, %v39, 0
    %v87 = vsel %vm61, %v40, 0
    %v90 = vsel %vm61, %v41, 0
    %v93 = vsel %vm61, %v42, 0
    %v96 = vsel %vm61, %v43, 0
    %v99 = vsel %vm61, %v44, 0
    %v102 = vsel %vm61, %v45, 0
    %v105 = vsel %vm61, %v46, 0
    %v108 = vsel %vm61, %v47, 0
    %v111 = vsel %vm61, %v48, 0
    %v114 = vsel %vm61, %v49, 0
    %v117 = vsel %vm61, %v50, 0
    %v120 = vsel %vm61, %v51, 0
    %v123 = vsel %vm61, %v52, 0
    %v126 = vsel %vm61, %v53, 0
    %v129 = vsel %vm61, %v54, 0
    %v132 = vsel %vm61, %v55, 0
    %v135 = vsel %vm61, %v56, 0
    %137 = vmatprep.subr.mxu0 0.0
    %138 = vmatpush1.msra.mxu0 0.0
    %139 = vmatprep.subr.mxu0 0.0
    %140 = vmatpush1.msra.mxu0 0.0
    %141 = vmatprep.subr.mxu0 0.0
    %142 = vmatpush1.msra.mxu0 0.0
    %143 = vmatprep.subr.mxu0 0.0
    %144 = vmatpush1.msra.mxu0 0.0
    %145 = vmatprep.subr.mxu0 0.0
    %146 = vmatpush1.msra.mxu0 0.0
    %147 = vmatprep.subr.mxu0 0.0
    %148 = vmatpush1.msra.mxu0 0.0
    %149 = vmatprep.subr.mxu0 0.0
    %150 = vmatpush1.msra.mxu0 0.0
    %151 = vmatprep.subr.mxu0 0.0
    %152 = vmatpush1.msra.mxu0 0.0
    %153 = vmatprep.subr.mxu0 0.0
    %154 = vmatpush1.msra.mxu0 0.0
    %155 = vmatprep.subr.mxu0 0.0
    %156 = vmatpush1.msra.mxu0 0.0
    %157 = vmatprep.subr.mxu0 0.0
    %158 = vmatpush1.msra.mxu0 0.0
    %159 = vmatprep.subr.mxu0 0.0
    %160 = vmatpush1.msra.mxu0 0.0
    %161 = vmatprep.subr.mxu0 0.0
    %162 = vmatpush1.msra.mxu0 %v60
    %163 = vmatprep.subr.mxu0 0.0
    %164 = vmatpush1.msra.mxu0 %v59
    %165 = vmatprep.subr.mxu0 0.0
    %166 = vmatpush1.msra.mxu0 %v58
    %167 = vmatprep.subr.mxu0 0.0
    %168 = vmatpush1.msra.mxu0 %v57
    %169 = vmatprep.subr.mxu0 0.0
    %170 = vmatpush2.msra.mxu0 0.0
    %171 = vmatprep.subr.mxu0 0.0
    %172 = vmatpush2.msra.mxu0 0.0
    %173 = vmatprep.subr.mxu0 0.0
    %174 = vmatpush2.msra.mxu0 0.0
    %175 = vmatprep.subr.mxu0 0.0
    %176 = vmatpush2.msra.mxu0 0.0
    %177 = vmatprep.subr.mxu0 0.0
    %178 = vmatpush2.msra.mxu0 0.0
    %179 = vmatprep.subr.mxu0 0.0
    %180 = vmatpush2.msra.mxu0 0.0
    %181 = vmatprep.subr.mxu0 0.0
    %182 = vmatpush2.msra.mxu0 0.0
    %183 = vmatprep.subr.mxu0 0.0
    %184 = vmatpush2.msra.mxu0 0.0
    %185 = vmatprep.subr.mxu0 0.0
    %186 = vmatpush2.msra.mxu0 0.0
    %187 = vmatprep.subr.mxu0 0.0
    %188 = vmatpush2.msra.mxu0 0.0
    %189 = vmatprep.subr.mxu0 0.0
    %190 = vmatpush2.msra.mxu0 0.0
    %191 = vmatprep.subr.mxu0 0.0
    %192 = vmatpush2.msra.mxu0 0.0
    %193 = vmatprep.subr.mxu0 0.0
    %194 = vmatpush2.msra.mxu0 0.0
    %195 = vmatprep.subr.mxu0 0.0
    %196 = vmatpush2.msra.mxu0 0.0
    %197 = vmatprep.subr.mxu0 0.0
    %198 = vmatpush2.msra.mxu0 0.0
    %199 = vmatprep.subr.mxu0 0.0
    %200 = vmatpush2.msra.mxu0 0.0
    %201 = vmatprep.mubr.f32.mxu0 0.0
    %202 = vmatmul.mubr.f32.gmra.mxu0 %v63
    %v203 = vpop.f32.mrf.mxu0
    %v204 = vadd.f32 0.0, %v203
    %v205 = vpop.f32.mrf.mxu0
    %206 = vmatprep.mubr.f32.mxu0 0.0
    %207 = vmatmul.mubr.f32.gmra.mxu0 %v66
    %v208 = vpop.f32.mrf.mxu0
    %v209 = vadd.f32 0.0, %v208
    %v210 = vpop.f32.mrf.mxu0
    %211 = vmatprep.mubr.f32.mxu0 0.0
    %212 = vmatmul.mubr.f32.gmra.mxu0 %v69
    %v213 = vpop.f32.mrf.mxu0
    %v214 = vadd.f32 0.0, %v213
    %v215 = vpop.f32.mrf.mxu0
    %216 = vmatprep.mubr.f32.mxu0 0.0
    %217 = vmatmul.mubr.f32.gmra.mxu0 %v72
    %v218 = vpop.f32.mrf.mxu0
    %v219 = vadd.f32 0.0, %v218
    %v220 = vpop.f32.mrf.mxu0
    %221 = vmatprep.mubr.f32.mxu0 0.0
    %222 = vmatmul.mubr.f32.gmra.mxu0 %v75
    %v223 = vpop.f32.mrf.mxu0
    %v224 = vadd.f32 0.0, %v223
    %v225 = vpop.f32.mrf.mxu0
    %226 = vmatprep.mubr.f32.mxu0 0.0
    %227 = vmatmul.mubr.f32.gmra.mxu0 %v78
    %v228 = vpop.f32.mrf.mxu0
    %v229 = vadd.f32 0.0, %v228
    %v230 = vpop.f32.mrf.mxu0
    %231 = vmatprep.mubr.f32.mxu0 0.0
    %232 = vmatmul.mubr.f32.gmra.mxu0 %v81
    %v233 = vpop.f32.mrf.mxu0
    %v234 = vadd.f32 0.0, %v233
    %v235 = vpop.f32.mrf.mxu0
    %236 = vmatprep.mubr.f32.mxu0 0.0
    %237 = vmatmul.mubr.f32.gmra.mxu0 %v84
    %v238 = vpop.f32.mrf.mxu0
    %v239 = vadd.f32 0.0, %v238
    %v240 = vpop.f32.mrf.mxu0
    %241 = vmatprep.mubr.f32.mxu0 0.0
    %242 = vmatmul.mubr.f32.gmra.mxu0 %v87
    %v243 = vpop.f32.mrf.mxu0
    %v244 = vadd.f32 0.0, %v243
    %v245 = vpop.f32.mrf.mxu0
    %246 = vmatprep.mubr.f32.mxu0 0.0
    %247 = vmatmul.mubr.f32.gmra.mxu0 %v90
    %v248 = vpop.f32.mrf.mxu0
    %v249 = vadd.f32 0.0, %v248
    %v250 = vpop.f32.mrf.mxu0
    %251 = vmatprep.mubr.f32.mxu0 0.0
    %252 = vmatmul.mubr.f32.gmra.mxu0 %v93
    %v253 = vpop.f32.mrf.mxu0
    %v254 = vadd.f32 0.0, %v253
    %v255 = vpop.f32.mrf.mxu0
    %256 = vmatprep.mubr.f32.mxu0 0.0
    %257 = vmatmul.mubr.f32.gmra.mxu0 %v96
    %v258 = vpop.f32.mrf.mxu0
    %v259 = vadd.f32 0.0, %v258
    %v260 = vpop.f32.mrf.mxu0
    %261 = vmatprep.mubr.f32.mxu0 0.0
    %262 = vmatmul.mubr.f32.gmra.mxu0 %v99
    %v263 = vpop.f32.mrf.mxu0
    %v264 = vadd.f32 0.0, %v263
    %v265 = vpop.f32.mrf.mxu0
    %266 = vmatprep.mubr.f32.mxu0 0.0
    %267 = vmatmul.mubr.f32.gmra.mxu0 %v102
    %v268 = vpop.f32.mrf.mxu0
    %v269 = vadd.f32 0.0, %v268
    %v270 = vpop.f32.mrf.mxu0
    %271 = vmatprep.mubr.f32.mxu0 0.0
    %272 = vmatmul.mubr.f32.gmra.mxu0 %v105
    %v273 = vpop.f32.mrf.mxu0
    %v274 = vadd.f32 0.0, %v273
    %v275 = vpop.f32.mrf.mxu0
    %276 = vmatprep.mubr.f32.mxu0 0.0
    %277 = vmatmul.mubr.f32.gmra.mxu0 %v108
    %v278 = vpop.f32.mrf.mxu0
    %v279 = vadd.f32 0.0, %v278
    %v280 = vpop.f32.mrf.mxu0
    %281 = vmatprep.mubr.f32.mxu0 0.0
    %282 = vmatmul.mubr.f32.gmra.mxu0 %v111
    %v283 = vpop.f32.mrf.mxu0
    %v284 = vadd.f32 0.0, %v283
    %v285 = vpop.f32.mrf.mxu0
    %286 = vmatprep.mubr.f32.mxu0 0.0
    %287 = vmatmul.mubr.f32.gmra.mxu0 %v114
    %v288 = vpop.f32.mrf.mxu0
    %v289 = vadd.f32 0.0, %v288
    %v290 = vpop.f32.mrf.mxu0
    %291 = vmatprep.mubr.f32.mxu0 0.0
    %292 = vmatmul.mubr.f32.gmra.mxu0 %v117
    %v293 = vpop.f32.mrf.mxu0
    %v294 = vadd.f32 0.0, %v293
    %v295 = vpop.f32.mrf.mxu0
    %296 = vmatprep.mubr.f32.mxu0 0.0
    %297 = vmatmul.mubr.f32.gmra.mxu0 %v120
    %v298 = vpop.f32.mrf.mxu0
    %v299 = vadd.f32 0.0, %v298
    %v300 = vpop.f32.mrf.mxu0
    %301 = vmatprep.mubr.f32.mxu0 0.0
    %302 = vmatmul.mubr.f32.gmra.mxu0 %v123
    %v303 = vpop.f32.mrf.mxu0
    %v304 = vadd.f32 0.0, %v303
    %v305 = vpop.f32.mrf.mxu0
    %306 = vmatprep.mubr.f32.mxu0 0.0
    %307 = vmatmul.mubr.f32.gmra.mxu0 %v126
    %v308 = vpop.f32.mrf.mxu0
    %v309 = vadd.f32 0.0, %v308
    %v310 = vpop.f32.mrf.mxu0
    %311 = vmatprep.mubr.f32.mxu0 0.0
    %312 = vmatmul.mubr.f32.gmra.mxu0 %v129
    %v313 = vpop.f32.mrf.mxu0
    %v314 = vadd.f32 0.0, %v313
    %v315 = vpop.f32.mrf.mxu0
    %316 = vmatprep.mubr.f32.mxu0 0.0
    %317 = vmatmul.mubr.f32.gmra.mxu0 %v132
    %v318 = vpop.f32.mrf.mxu0
    %v319 = vadd.f32 0.0, %v318
    %v320 = vpop.f32.mrf.mxu0
    %321 = vmatprep.mubr.f32.mxu0 0.0
    %322 = vmatmul.mubr.f32.gmra.mxu0 %v135
    %v323 = vpop.f32.mrf.mxu0
    %v324 = vadd.f32 0.0, %v323
    %v325 = vpop.f32.mrf.mxu0
    %326 = vdwg.mxu0
    %vm327 = vcmask 523264
    %v328 = vsel %vm327, %v204, 0.0
    %v329 = vsel %vm327, %v209, 0.0
    %v330 = vadd.f32 %v328, %v329
    %v331 = vsel %vm327, %v214, 0.0
    %v332 = vadd.f32 %v330, %v331
    %v333 = vsel %vm327, %v219, 0.0
    %v334 = vadd.f32 %v332, %v333
    %v335 = vsel %vm327, %v224, 0.0
    %v336 = vadd.f32 %v334, %v335
    %v337 = vsel %vm327, %v229, 0.0
    %v338 = vadd.f32 %v336, %v337
    %v339 = vsel %vm327, %v234, 0.0
    %v340 = vadd.f32 %v338, %v339
    %v341 = vsel %vm327, %v239, 0.0
    %v342 = vadd.f32 %v340, %v341
    %v343 = vsel %vm327, %v244, 0.0
    %v344 = vadd.f32 %v342, %v343
    %v345 = vsel %vm327, %v249, 0.0
    %v346 = vadd.f32 %v344, %v345
    %v347 = vsel %vm327, %v254, 0.0
    %v348 = vadd.f32 %v346, %v347
    %v349 = vsel %vm327, %v259, 0.0
    %v350 = vadd.f32 %v348, %v349
    %v351 = vsel %vm327, %v264, 0.0
    %v352 = vadd.f32 %v350, %v351
    %v353 = vsel %vm327, %v269, 0.0
    %v354 = vadd.f32 %v352, %v353
    %v355 = vsel %vm327, %v274, 0.0
    %v356 = vadd.f32 %v354, %v355
    %v357 = vsel %vm327, %v279, 0.0
    %v358 = vadd.f32 %v356, %v357
    %v359 = vsel %vm327, %v284, 0.0
    %v360 = vadd.f32 %v358, %v359
    %v361 = vsel %vm327, %v289, 0.0
    %v362 = vadd.f32 %v360, %v361
    %v363 = vsel %vm327, %v294, 0.0
    %v364 = vadd.f32 %v362, %v363
    %v365 = vsel %vm327, %v299, 0.0
    %v366 = vadd.f32 %v364, %v365
    %v367 = vsel %vm327, %v304, 0.0
    %v368 = vadd.f32 %v366, %v367
    %v369 = vsel %vm327, %v309, 0.0
    %v370 = vadd.f32 %v368, %v369
    %v371 = vsel %vm327, %v314, 0.0
    %v372 = vadd.f32 %v370, %v371
    %v373 = vsel %vm327, %v319, 0.0
    %v374 = vadd.f32 %v372, %v373
    %v375 = vsel %vm327, %v324, 0.0
    %v376 = vadd.f32 %v374, %v375
    %v377 = vrot.slane %v376, 4
    %v378 = vadd.f32 %v376, %v377
    %v379 = vrot.slane %v378, 2
    %v380 = vadd.f32 %v378, %v379
    %v381 = vrot.slane %v380, 1
    %v382 = vadd.f32 %v380, %v381
    %v383 = vrcp.pop 200.0
    %v384 = vmul.f32 %v382, %v383
    %v385 = vsub.f32 %v204, %v384
    %v386 = vsub.f32 %v209, %v384
    %v387 = vsub.f32 %v214, %v384
    %v388 = vsub.f32 %v219, %v384
    %v389 = vsub.f32 %v224, %v384
    %v390 = vsub.f32 %v229, %v384
    %v391 = vsub.f32 %v234, %v384
    %v392 = vsub.f32 %v239, %v384
    %v393 = vsub.f32 %v244, %v384
    %v394 = vsub.f32 %v249, %v384
    %v395 = vsub.f32 %v254, %v384
    %v396 = vsub.f32 %v259, %v384
    %v397 = vsub.f32 %v264, %v384
    %v398 = vsub.f32 %v269, %v384
    %v399 = vsub.f32 %v274, %v384
    %v400 = vsub.f32 %v279, %v384
    %v401 = vsub.f32 %v284, %v384
    %v402 = vsub.f32 %v289, %v384
    %v403 = vsub.f32 %v294, %v384
    %v404 = vsub.f32 %v299, %v384
    %v405 = vsub.f32 %v304, %v384
    %v406 = vsub.f32 %v309, %v384
    %v407 = vsub.f32 %v314, %v384
    %v408 = vsub.f32 %v319, %v384
    %v409 = vsub.f32 %v324, %v384
    %v410 = vmul.f32 %v385, %v385
    %v411 = vmul.f32 %v386, %v386
    %v412 = vmul.f32 %v387, %v387
    %v413 = vmul.f32 %v388, %v388
    %v414 = vmul.f32 %v389, %v389
    %v415 = vmul.f32 %v390, %v390
    %v416 = vmul.f32 %v391, %v391
    %v417 = vmul.f32 %v392, %v392
    %v418 = vmul.f32 %v393, %v393
    %v419 = vmul.f32 %v394, %v394
    %v420 = vmul.f32 %v395, %v395
    %v421 = vmul.f32 %v396, %v396
    %v422 = vmul.f32 %v397, %v397
    %v423 = vmul.f32 %v398, %v398
    %v424 = vmul.f32 %v399, %v399
    %v425 = vmul.f32 %v400, %v400
    %v426 = vmul.f32 %v401, %v401
    %v427 = vmul.f32 %v402, %v402
    %v428 = vmul.f32 %v403, %v403
    %v429 = vmul.f32 %v404, %v404
    %v430 = vmul.f32 %v405, %v405
    %v431 = vmul.f32 %v406, %v406
    %v432 = vmul.f32 %v407, %v407
    %v433 = vmul.f32 %v408, %v408
    %v434 = vmul.f32 %v409, %v409
    %v435 = vsel %vm327, %v410, 0.0
    %v436 = vsel %vm327, %v411, 0.0
    %v437 = vadd.f32 %v435, %v436
    %v438 = vsel %vm327, %v412, 0.0
    %v439 = vadd.f32 %v437, %v438
    %v440 = vsel %vm327, %v413, 0.0
    %v441 = vadd.f32 %v439, %v440
    %v442 = vsel %vm327, %v414, 0.0
    %v443 = vadd.f32 %v441, %v442
    %v444 = vsel %vm327, %v415, 0.0
    %v445 = vadd.f32 %v443, %v444
    %v446 = vsel %vm327, %v416, 0.0
    %v447 = vadd.f32 %v445, %v446
    %v448 = vsel %vm327, %v417, 0.0
    %v449 = vadd.f32 %v447, %v448
    %v450 = vsel %vm327, %v418, 0.0
    %v451 = vadd.f32 %v449, %v450
    %v452 = vsel %vm327, %v419, 0.0
    %v453 = vadd.f32 %v451, %v452
    %v454 = vsel %vm327, %v420, 0.0
    %v455 = vadd.f32 %v453, %v454
    %v456 = vsel %vm327, %v421, 0.0
    %v457 = vadd.f32 %v455, %v456
    %v458 = vsel %vm327, %v422, 0.0
    %v459 = vadd.f32 %v457, %v458
    %v460 = vsel %vm327, %v423, 0.0
    %v461 = vadd.f32 %v459, %v460
    %v462 = vsel %vm327, %v424, 0.0
    %v463 = vadd.f32 %v461, %v462
    %v464 = vsel %vm327, %v425, 0.0
    %v465 = vadd.f32 %v463, %v464
    %v466 = vsel %vm327, %v426, 0.0
    %v467 = vadd.f32 %v465, %v466
    %v468 = vsel %vm327, %v427, 0.0
    %v469 = vadd.f32 %v467, %v468
    %v470 = vsel %vm327, %v428, 0.0
    %v471 = vadd.f32 %v469, %v470
    %v472 = vsel %vm327, %v429, 0.0
    %v473 = vadd.f32 %v471, %v472
    %v474 = vsel %vm327, %v430, 0.0
    %v475 = vadd.f32 %v473, %v474
    %v476 = vsel %vm327, %v431, 0.0
    %v477 = vadd.f32 %v475, %v476
    %v478 = vsel %vm327, %v432, 0.0
    %v479 = vadd.f32 %v477, %v478
    %v480 = vsel %vm327, %v433, 0.0
    %v481 = vadd.f32 %v479, %v480
    %v482 = vsel %vm327, %v434, 0.0
    %v483 = vadd.f32 %v481, %v482
    %v484 = vrot.slane %v483, 4
    %v485 = vadd.f32 %v483, %v484
    %v486 = vrot.slane %v485, 2
    %v487 = vadd.f32 %v485, %v486
    %v488 = vrot.slane %v487, 1
    %v489 = vadd.f32 %v487, %v488
    %v490 = vmul.f32 %v489, %v383
    %v491 = vld [vmem:[%s2] sm:$0x1]
    %v492 = vadd.f32 %v490, 1e-05
    %v493 = vrsqrt.pop %v492
    %v494 = vmul.f32 %v491, %v493
    %v496 = vlaneseq
    %v497 = vshrl.u32 %v496, 7
    %v498 = vsub.s32 0, %v497
    %v499 = vrot.slane %v494, %v498
    %v501 = vmul.f32 %v385, %v499
    %v502 = vmul.f32 %v386, %v499
    %v503 = vmul.f32 %v387, %v499
    %v504 = vmul.f32 %v388, %v499
    %v505 = vmul.f32 %v389, %v499
    %v506 = vmul.f32 %v390, %v499
    %v507 = vmul.f32 %v391, %v499
    %v508 = vmul.f32 %v392, %v499
    %v509 = vmul.f32 %v393, %v499
    %v510 = vmul.f32 %v394, %v499
    %v511 = vmul.f32 %v395, %v499
    %v512 = vmul.f32 %v396, %v499
    %v513 = vmul.f32 %v397, %v499
    %v514 = vmul.f32 %v398, %v499
    %v515 = vmul.f32 %v399, %v499
    %v516 = vmul.f32 %v400, %v499
    %v517 = vmul.f32 %v401, %v499
    %v518 = vmul.f32 %v402, %v499
    %v519 = vmul.f32 %v403, %v499
    %v520 = vmul.f32 %v404, %v499
    %v521 = vmul.f32 %v405, %v499
    %v522 = vmul.f32 %v406, %v499
    %v523 = vmul.f32 %v407, %v499
    %v524 = vmul.f32 %v408, %v499
    %v525 = vmul.f32 %v409, %v499
    %v526 = vld [vmem:[%s3] sm:$0x1]
    %v528 = vlaneseq
    %v529 = vshrl.u32 %v528, 7
    %v530 = vsub.s32 0, %v529
    %v531 = vrot.slane %v526, %v530
    %v533 = vadd.f32 %v501, %v531
    %v534 = vadd.f32 %v502, %v531
    %v535 = vadd.f32 %v503, %v531
    %v536 = vadd.f32 %v504, %v531
    %v537 = vadd.f32 %v505, %v531
    %v538 = vadd.f32 %v506, %v531
    %v539 = vadd.f32 %v507, %v531
    %v540 = vadd.f32 %v508, %v531
    %v541 = vadd.f32 %v509, %v531
    %v542 = vadd.f32 %v510, %v531
    %v543 = vadd.f32 %v511, %v531
    %v544 = vadd.f32 %v512, %v531
    %v545 = vadd.f32 %v513, %v531
    %v546 = vadd.f32 %v514, %v531
    %v547 = vadd.f32 %v515, %v531
    %v548 = vadd.f32 %v516, %v531
    %v549 = vadd.f32 %v517, %v531
    %v550 = vadd.f32 %v518, %v531
    %v551 = vadd.f32 %v519, %v531
    %v552 = vadd.f32 %v520, %v531
    %v553 = vadd.f32 %v521, %v531
    %v554 = vadd.f32 %v522, %v531
    %v555 = vadd.f32 %v523, %v531
    %v556 = vadd.f32 %v524, %v531
    %v557 = vadd.f32 %v525, %v531
    %v558 = vmax.f32 %v533, 0.0
    %v559 = vmax.f32 %v534, 0.0
    %v560 = vmax.f32 %v535, 0.0
    %v561 = vmax.f32 %v536, 0.0
    %v562 = vmax.f32 %v537, 0.0
    %v563 = vmax.f32 %v538, 0.0
    %v564 = vmax.f32 %v539, 0.0
    %v565 = vmax.f32 %v540, 0.0
    %v566 = vmax.f32 %v541, 0.0
    %v567 = vmax.f32 %v542, 0.0
    %v568 = vmax.f32 %v543, 0.0
    %v569 = vmax.f32 %v544, 0.0
    %v570 = vmax.f32 %v545, 0.0
    %v571 = vmax.f32 %v546, 0.0
    %v572 = vmax.f32 %v547, 0.0
    %v573 = vmax.f32 %v548, 0.0
    %v574 = vmax.f32 %v549, 0.0
    %v575 = vmax.f32 %v550, 0.0
    %v576 = vmax.f32 %v551, 0.0
    %v577 = vmax.f32 %v552, 0.0
    %v578 = vmax.f32 %v553, 0.0
    %v579 = vmax.f32 %v554, 0.0
    %v580 = vmax.f32 %v555, 0.0
    %v581 = vmax.f32 %v556, 0.0
    %v582 = vmax.f32 %v557, 0.0
    %v583 = vld [vmem:[%s4] sm:$0xff]
    %v584 = vld [vmem:[%s4 + $0x8] sm:$0xff]
    %v585 = vld [vmem:[%s4 + $0x10] sm:$0xff]
    %v586 = vld [vmem:[%s4 + $0x18] sm:$0xff]
    %v587 = vld [vmem:[%s4 + $0x20] sm:$0xff]
    %v588 = vld [vmem:[%s4 + $0x28] sm:$0xff]
    %v589 = vld [vmem:[%s4 + $0x30] sm:$0xff]
    %v590 = vld [vmem:[%s4 + $0x38] sm:$0xff]
    %v591 = vld [vmem:[%s5] sm:$0x1]
    %v593 = vlaneseq
    %v594 = vshrl.u32 %v593, 7
    %v595 = vsub.s32 0, %v594
    %v596 = vrot.slane %v591, %v595
    %v599 = vsel %vm327, %v558, 0
    %v602 = vsel %vm327, %v559, 0
    %v605 = vsel %vm327, %v560, 0
    %v608 = vsel %vm327, %v561, 0
    %v611 = vsel %vm327, %v562, 0
    %v614 = vsel %vm327, %v563, 0
    %v617 = vsel %vm327, %v564, 0
    %v620 = vsel %vm327, %v565, 0
    %v623 = vsel %vm327, %v566, 0
    %v626 = vsel %vm327, %v567, 0
    %v629 = vsel %vm327, %v568, 0
    %v632 = vsel %vm327, %v569, 0
    %v635 = vsel %vm327, %v570, 0
    %v638 = vsel %vm327, %v571, 0
    %v641 = vsel %vm327, %v572, 0
    %v644 = vsel %vm327, %v573, 0
    %v647 = vsel %vm327, %v574, 0
    %v650 = vsel %vm327, %v575, 0
    %v653 = vsel %vm327, %v576, 0
    %v656 = vsel %vm327, %v577, 0
    %v659 = vsel %vm327, %v578, 0
    %v662 = vsel %vm327, %v579, 0
    %v665 = vsel %vm327, %v580, 0
    %v668 = vsel %vm327, %v581, 0
    %v671 = vsel %vm327, %v582, 0
    %673 = vmatprep.subr.mxu0 0.0
    %674 = vmatpush1.msra.mxu0 0.0
    %675 = vmatprep.subr.mxu0 0.0
    %676 = vmatpush1.msra.mxu0 0.0
    %677 = vmatprep.subr.mxu0 0.0
    %678 = vmatpush1.msra.mxu0 0.0
    %679 = vmatprep.subr.mxu0 0.0
    %680 = vmatpush1.msra.mxu0 0.0
    %681 = vmatprep.subr.mxu0 0.0
    %682 = vmatpush1.msra.mxu0 0.0
    %683 = vmatprep.subr.mxu0 0.0
    %684 = vmatpush1.msra.mxu0 0.0
    %685 = vmatprep.subr.mxu0 0.0
    %686 = vmatpush1.msra.mxu0 0.0
    %687 = vmatprep.subr.mxu0 0.0
    %688 = vmatpush1.msra.mxu0 0.0
    %689 = vmatprep.subr.mxu0 0.0
    %690 = vmatpush1.msra.mxu0 %v590
    %691 = vmatprep.subr.mxu0 0.0
    %692 = vmatpush1.msra.mxu0 %v589
    %693 = vmatprep.subr.mxu0 0.0
    %694 = vmatpush1.msra.mxu0 %v588
    %695 = vmatprep.subr.mxu0 0.0
    %696 = vmatpush1.msra.mxu0 %v587
    %697 = vmatprep.subr.mxu0 0.0
    %698 = vmatpush1.msra.mxu0 %v586
    %699 = vmatprep.subr.mxu0 0.0
    %700 = vmatpush1.msra.mxu0 %v585
    %701 = vmatprep.subr.mxu0 0.0
    %702 = vmatpush1.msra.mxu0 %v584
    %703 = vmatprep.subr.mxu0 0.0
    %704 = vmatpush1.msra.mxu0 %v583
    %705 = vmatprep.subr.mxu0 0.0
    %706 = vmatpush2.msra.mxu0 0.0
    %707 = vmatprep.subr.mxu0 0.0
    %708 = vmatpush2.msra.mxu0 0.0
    %709 = vmatprep.subr.mxu0 0.0
    %710 = vmatpush2.msra.mxu0 0.0
    %711 = vmatprep.subr.mxu0 0.0
    %712 = vmatpush2.msra.mxu0 0.0
    %713 = vmatprep.subr.mxu0 0.0
    %714 = vmatpush2.msra.mxu0 0.0
    %715 = vmatprep.subr.mxu0 0.0
    %716 = vmatpush2.msra.mxu0 0.0
    %717 = vmatprep.subr.mxu0 0.0
    %718 = vmatpush2.msra.mxu0 0.0
    %719 = vmatprep.subr.mxu0 0.0
    %720 = vmatpush2.msra.mxu0 0.0
    %721 = vmatprep.subr.mxu0 0.0
    %722 = vmatpush2.msra.mxu0 0.0
    %723 = vmatprep.subr.mxu0 0.0
    %724 = vmatpush2.msra.mxu0 0.0
    %725 = vmatprep.subr.mxu0 0.0
    %726 = vmatpush2.msra.mxu0 0.0
    %727 = vmatprep.subr.mxu0 0.0
    %728 = vmatpush2.msra.mxu0 0.0
    %729 = vmatprep.subr.mxu0 0.0
    %730 = vmatpush2.msra.mxu0 0.0
    %731 = vmatprep.subr.mxu0 0.0
    %732 = vmatpush2.msra.mxu0 0.0
    %733 = vmatprep.subr.mxu0 0.0
    %734 = vmatpush2.msra.mxu0 0.0
    %735 = vmatprep.subr.mxu0 0.0
    %736 = vmatpush2.msra.mxu0 0.0
    %737 = vmatprep.mubr.f32.mxu0 0.0
    %738 = vmatmul.mubr.f32.gmra.mxu0 %v599
    %v739 = vpop.f32.mrf.mxu0
    %v740 = vadd.f32 %v596, %v739
    %v741 = vpop.f32.mrf.mxu0
    %742 = vmatprep.mubr.f32.mxu0 0.0
    %743 = vmatmul.mubr.f32.gmra.mxu0 %v602
    %v744 = vpop.f32.mrf.mxu0
    %v745 = vadd.f32 %v596, %v744
    %v746 = vpop.f32.mrf.mxu0
    %747 = vmatprep.mubr.f32.mxu0 0.0
    %748 = vmatmul.mubr.f32.gmra.mxu0 %v605
    %v749 = vpop.f32.mrf.mxu0
    %v750 = vadd.f32 %v596, %v749
    %v751 = vpop.f32.mrf.mxu0
    %752 = vmatprep.mubr.f32.mxu0 0.0
    %753 = vmatmul.mubr.f32.gmra.mxu0 %v608
    %v754 = vpop.f32.mrf.mxu0
    %v755 = vadd.f32 %v596, %v754
    %v756 = vpop.f32.mrf.mxu0
    %757 = vmatprep.mubr.f32.mxu0 0.0
    %758 = vmatmul.mubr.f32.gmra.mxu0 %v611
    %v759 = vpop.f32.mrf.mxu0
    %v760 = vadd.f32 %v596, %v759
    %v761 = vpop.f32.mrf.mxu0
    %762 = vmatprep.mubr.f32.mxu0 0.0
    %763 = vmatmul.mubr.f32.gmra.mxu0 %v614
    %v764 = vpop.f32.mrf.mxu0
    %v765 = vadd.f32 %v596, %v764
    %v766 = vpop.f32.mrf.mxu0
    %767 = vmatprep.mubr.f32.mxu0 0.0
    %768 = vmatmul.mubr.f32.gmra.mxu0 %v617
    %v769 = vpop.f32.mrf.mxu0
    %v770 = vadd.f32 %v596, %v769
    %v771 = vpop.f32.mrf.mxu0
    %772 = vmatprep.mubr.f32.mxu0 0.0
    %773 = vmatmul.mubr.f32.gmra.mxu0 %v620
    %v774 = vpop.f32.mrf.mxu0
    %v775 = vadd.f32 %v596, %v774
    %v776 = vpop.f32.mrf.mxu0
    %777 = vmatprep.mubr.f32.mxu0 0.0
    %778 = vmatmul.mubr.f32.gmra.mxu0 %v623
    %v779 = vpop.f32.mrf.mxu0
    %v780 = vadd.f32 %v596, %v779
    %v781 = vpop.f32.mrf.mxu0
    %782 = vmatprep.mubr.f32.mxu0 0.0
    %783 = vmatmul.mubr.f32.gmra.mxu0 %v626
    %v784 = vpop.f32.mrf.mxu0
    %v785 = vadd.f32 %v596, %v784
    %v786 = vpop.f32.mrf.mxu0
    %787 = vmatprep.mubr.f32.mxu0 0.0
    %788 = vmatmul.mubr.f32.gmra.mxu0 %v629
    %v789 = vpop.f32.mrf.mxu0
    %v790 = vadd.f32 %v596, %v789
    %v791 = vpop.f32.mrf.mxu0
    %792 = vmatprep.mubr.f32.mxu0 0.0
    %793 = vmatmul.mubr.f32.gmra.mxu0 %v632
    %v794 = vpop.f32.mrf.mxu0
    %v795 = vadd.f32 %v596, %v794
    %v796 = vpop.f32.mrf.mxu0
    %797 = vmatprep.mubr.f32.mxu0 0.0
    %798 = vmatmul.mubr.f32.gmra.mxu0 %v635
    %v799 = vpop.f32.mrf.mxu0
    %v800 = vadd.f32 %v596, %v799
    %v801 = vpop.f32.mrf.mxu0
    %802 = vmatprep.mubr.f32.mxu0 0.0
    %803 = vmatmul.mubr.f32.gmra.mxu0 %v638
    %v804 = vpop.f32.mrf.mxu0
    %v805 = vadd.f32 %v596, %v804
    %v806 = vpop.f32.mrf.mxu0
    %807 = vmatprep.mubr.f32.mxu0 0.0
    %808 = vmatmul.mubr.f32.gmra.mxu0 %v641
    %v809 = vpop.f32.mrf.mxu0
    %v810 = vadd.f32 %v596, %v809
    %v811 = vpop.f32.mrf.mxu0
    %812 = vmatprep.mubr.f32.mxu0 0.0
    %813 = vmatmul.mubr.f32.gmra.mxu0 %v644
    %v814 = vpop.f32.mrf.mxu0
    %v815 = vadd.f32 %v596, %v814
    %v816 = vpop.f32.mrf.mxu0
    %817 = vmatprep.mubr.f32.mxu0 0.0
    %818 = vmatmul.mubr.f32.gmra.mxu0 %v647
    %v819 = vpop.f32.mrf.mxu0
    %v820 = vadd.f32 %v596, %v819
    %v821 = vpop.f32.mrf.mxu0
    %822 = vmatprep.mubr.f32.mxu0 0.0
    %823 = vmatmul.mubr.f32.gmra.mxu0 %v650
    %v824 = vpop.f32.mrf.mxu0
    %v825 = vadd.f32 %v596, %v824
    %v826 = vpop.f32.mrf.mxu0
    %827 = vmatprep.mubr.f32.mxu0 0.0
    %828 = vmatmul.mubr.f32.gmra.mxu0 %v653
    %v829 = vpop.f32.mrf.mxu0
    %v830 = vadd.f32 %v596, %v829
    %v831 = vpop.f32.mrf.mxu0
    %832 = vmatprep.mubr.f32.mxu0 0.0
    %833 = vmatmul.mubr.f32.gmra.mxu0 %v656
    %v834 = vpop.f32.mrf.mxu0
    %v835 = vadd.f32 %v596, %v834
    %v836 = vpop.f32.mrf.mxu0
    %837 = vmatprep.mubr.f32.mxu0 0.0
    %838 = vmatmul.mubr.f32.gmra.mxu0 %v659
    %v839 = vpop.f32.mrf.mxu0
    %v840 = vadd.f32 %v596, %v839
    %v841 = vpop.f32.mrf.mxu0
    %842 = vmatprep.mubr.f32.mxu0 0.0
    %843 = vmatmul.mubr.f32.gmra.mxu0 %v662
    %v844 = vpop.f32.mrf.mxu0
    %v845 = vadd.f32 %v596, %v844
    %v846 = vpop.f32.mrf.mxu0
    %847 = vmatprep.mubr.f32.mxu0 0.0
    %848 = vmatmul.mubr.f32.gmra.mxu0 %v665
    %v849 = vpop.f32.mrf.mxu0
    %v850 = vadd.f32 %v596, %v849
    %v851 = vpop.f32.mrf.mxu0
    %852 = vmatprep.mubr.f32.mxu0 0.0
    %853 = vmatmul.mubr.f32.gmra.mxu0 %v668
    %v854 = vpop.f32.mrf.mxu0
    %v855 = vadd.f32 %v596, %v854
    %v856 = vpop.f32.mrf.mxu0
    %857 = vmatprep.mubr.f32.mxu0 0.0
    %858 = vmatmul.mubr.f32.gmra.mxu0 %v671
    %v859 = vpop.f32.mrf.mxu0
    %v860 = vadd.f32 %v596, %v859
    %v861 = vpop.f32.mrf.mxu0
    %862 = vdwg.mxu0
    %v863 = vmax.f32 %v740, 0.0
    %v864 = vmax.f32 %v745, 0.0
    %v865 = vmax.f32 %v750, 0.0
    %v866 = vmax.f32 %v755, 0.0
    %v867 = vmax.f32 %v760, 0.0
    %v868 = vmax.f32 %v765, 0.0
    %v869 = vmax.f32 %v770, 0.0
    %v870 = vmax.f32 %v775, 0.0
    %v871 = vmax.f32 %v780, 0.0
    %v872 = vmax.f32 %v785, 0.0
    %v873 = vmax.f32 %v790, 0.0
    %v874 = vmax.f32 %v795, 0.0
    %v875 = vmax.f32 %v800, 0.0
    %v876 = vmax.f32 %v805, 0.0
    %v877 = vmax.f32 %v810, 0.0
    %v878 = vmax.f32 %v815, 0.0
    %v879 = vmax.f32 %v820, 0.0
    %v880 = vmax.f32 %v825, 0.0
    %v881 = vmax.f32 %v830, 0.0
    %v882 = vmax.f32 %v835, 0.0
    %v883 = vmax.f32 %v840, 0.0
    %v884 = vmax.f32 %v845, 0.0
    %v885 = vmax.f32 %v850, 0.0
    %v886 = vmax.f32 %v855, 0.0
    %v887 = vmax.f32 %v860, 0.0
    %v888 = vld [vmem:[%s6] sm:$0x1]
    %v890 = vlaneseq
    %v891 = vshrl.u32 %v890, 7
    %v892 = vsub.s32 0, %v891
    %v893 = vrot.slane %v888, %v892
    %v895 = vmul.f32 %v863, %v893
    %v896 = vmul.f32 %v864, %v893
    %v897 = vmul.f32 %v865, %v893
    %v898 = vmul.f32 %v866, %v893
    %v899 = vmul.f32 %v867, %v893
    %v900 = vmul.f32 %v868, %v893
    %v901 = vmul.f32 %v869, %v893
    %v902 = vmul.f32 %v870, %v893
    %v903 = vmul.f32 %v871, %v893
    %v904 = vmul.f32 %v872, %v893
    %v905 = vmul.f32 %v873, %v893
    %v906 = vmul.f32 %v874, %v893
    %v907 = vmul.f32 %v875, %v893
    %v908 = vmul.f32 %v876, %v893
    %v909 = vmul.f32 %v877, %v893
    %v910 = vmul.f32 %v878, %v893
    %v911 = vmul.f32 %v879, %v893
    %v912 = vmul.f32 %v880, %v893
    %v913 = vmul.f32 %v881, %v893
    %v914 = vmul.f32 %v882, %v893
    %v915 = vmul.f32 %v883, %v893
    %v916 = vmul.f32 %v884, %v893
    %v917 = vmul.f32 %v885, %v893
    %v918 = vmul.f32 %v886, %v893
    %v919 = vmul.f32 %v887, %v893
    %v920 = vsel %vm61, %v895, 0.0
    %921 = vadd.xlane.f32.xlu0 %v920
    %v922 = vpop.xlane.xlu0 %921
    %v923 = vsel %vm61, %v896, 0.0
    %924 = vadd.xlane.f32.xlu0 %v923
    %v925 = vpop.xlane.xlu0 %924
    %v926 = vsel %vm61, %v897, 0.0
    %927 = vadd.xlane.f32.xlu0 %v926
    %v928 = vpop.xlane.xlu0 %927
    %v929 = vsel %vm61, %v898, 0.0
    %930 = vadd.xlane.f32.xlu0 %v929
    %v931 = vpop.xlane.xlu0 %930
    %v932 = vsel %vm61, %v899, 0.0
    %933 = vadd.xlane.f32.xlu0 %v932
    %v934 = vpop.xlane.xlu0 %933
    %v935 = vsel %vm61, %v900, 0.0
    %936 = vadd.xlane.f32.xlu0 %v935
    %v937 = vpop.xlane.xlu0 %936
    %v938 = vsel %vm61, %v901, 0.0
    %939 = vadd.xlane.f32.xlu0 %v938
    %v940 = vpop.xlane.xlu0 %939
    %v941 = vsel %vm61, %v902, 0.0
    %942 = vadd.xlane.f32.xlu0 %v941
    %v943 = vpop.xlane.xlu0 %942
    %v944 = vsel %vm61, %v903, 0.0
    %945 = vadd.xlane.f32.xlu0 %v944
    %v946 = vpop.xlane.xlu0 %945
    %v947 = vsel %vm61, %v904, 0.0
    %948 = vadd.xlane.f32.xlu0 %v947
    %v949 = vpop.xlane.xlu0 %948
    %v950 = vsel %vm61, %v905, 0.0
    %951 = vadd.xlane.f32.xlu0 %v950
    %v952 = vpop.xlane.xlu0 %951
    %v953 = vsel %vm61, %v906, 0.0
    %954 = vadd.xlane.f32.xlu0 %v953
    %v955 = vpop.xlane.xlu0 %954
    %v956 = vsel %vm61, %v907, 0.0
    %957 = vadd.xlane.f32.xlu0 %v956
    %v958 = vpop.xlane.xlu0 %957
    %v959 = vsel %vm61, %v908, 0.0
    %960 = vadd.xlane.f32.xlu0 %v959
    %v961 = vpop.xlane.xlu0 %960
    %v962 = vsel %vm61, %v909, 0.0
    %963 = vadd.xlane.f32.xlu0 %v962
    %v964 = vpop.xlane.xlu0 %963
    %v965 = vsel %vm61, %v910, 0.0
    %966 = vadd.xlane.f32.xlu0 %v965
    %v967 = vpop.xlane.xlu0 %966
    %v968 = vsel %vm61, %v911, 0.0
    %969 = vadd.xlane.f32.xlu0 %v968
    %v970 = vpop.xlane.xlu0 %969
    %v971 = vsel %vm61, %v912, 0.0
    %972 = vadd.xlane.f32.xlu0 %v971
    %v973 = vpop.xlane.xlu0 %972
    %v974 = vsel %vm61, %v913, 0.0
    %975 = vadd.xlane.f32.xlu0 %v974
    %v976 = vpop.xlane.xlu0 %975
    %v977 = vsel %vm61, %v914, 0.0
    %978 = vadd.xlane.f32.xlu0 %v977
    %v979 = vpop.xlane.xlu0 %978
    %v980 = vsel %vm61, %v915, 0.0
    %981 = vadd.xlane.f32.xlu0 %v980
    %v982 = vpop.xlane.xlu0 %981
    %v983 = vsel %vm61, %v916, 0.0
    %984 = vadd.xlane.f32.xlu0 %v983
    %v985 = vpop.xlane.xlu0 %984
    %v986 = vsel %vm61, %v917, 0.0
    %987 = vadd.xlane.f32.xlu0 %v986
    %v988 = vpop.xlane.xlu0 %987
    %v989 = vsel %vm61, %v918, 0.0
    %990 = vadd.xlane.f32.xlu0 %v989
    %v991 = vpop.xlane.xlu0 %990
    %v992 = vsel %vm61, %v919, 0.0
    %993 = vadd.xlane.f32.xlu0 %v992
    %v994 = vpop.xlane.xlu0 %993
    %v995 = vld [vmem:[#allocation2] sm:$0x1]
    %997 = vset.pattern.permute.xlu0 0
    %998 = vperm.xlu0 %997, %v995
    %v999 = vpop.permute.xlu0 %998
    %v1001 = vlaneseq
    %v1002 = vshrl.u32 %v1001, 7
    %v1003 = vsub.s32 0, %v1002
    %v1004 = vrot.slane %v999, %v1003
    %v1005 = vadd.f32 %v922, %v1004
    %v1006 = vadd.f32 %v925, %v1004
    %v1007 = vadd.f32 %v928, %v1004
    %v1008 = vadd.f32 %v931, %v1004
    %v1009 = vadd.f32 %v934, %v1004
    %v1010 = vadd.f32 %v937, %v1004
    %v1011 = vadd.f32 %v940, %v1004
    %v1012 = vadd.f32 %v943, %v1004
    %v1013 = vadd.f32 %v946, %v1004
    %v1014 = vadd.f32 %v949, %v1004
    %v1015 = vadd.f32 %v952, %v1004
    %v1016 = vadd.f32 %v955, %v1004
    %v1017 = vadd.f32 %v958, %v1004
    %v1018 = vadd.f32 %v961, %v1004
    %v1019 = vadd.f32 %v964, %v1004
    %v1020 = vadd.f32 %v967, %v1004
    %v1021 = vadd.f32 %v970, %v1004
    %v1022 = vadd.f32 %v973, %v1004
    %v1023 = vadd.f32 %v976, %v1004
    %v1024 = vadd.f32 %v979, %v1004
    %v1025 = vadd.f32 %v982, %v1004
    %v1026 = vadd.f32 %v985, %v1004
    %v1027 = vadd.f32 %v988, %v1004
    %v1028 = vadd.f32 %v991, %v1004
    %v1029 = vadd.f32 %v994, %v1004
    %v1055 = vlaneseq
    %v1056 = vshrl.u32 %v1055, 7
    %v1057 = vsub.s32 0, %v1056
    %v1058 = vrot.slane %v1005, %v1057
    %v1059 = vlaneseq
    %v1060 = vshrl.u32 %v1059, 7
    %v1061 = vsub.s32 1, %v1060
    %v1062 = vrot.slane %v1005, %v1061
    %v1063 = vlaneseq
    %v1064 = vshrl.u32 %v1063, 7
    %v1065 = vsub.s32 2, %v1064
    %v1066 = vrot.slane %v1005, %v1065
    %v1067 = vlaneseq
    %v1068 = vshrl.u32 %v1067, 7
    %v1069 = vsub.s32 3, %v1068
    %v1070 = vrot.slane %v1005, %v1069
    %v1071 = vlaneseq
    %v1072 = vshrl.u32 %v1071, 7
    %v1073 = vsub.s32 4, %v1072
    %v1074 = vrot.slane %v1005, %v1073
    %v1075 = vlaneseq
    %v1076 = vshrl.u32 %v1075, 7
    %v1077 = vsub.s32 5, %v1076
    %v1078 = vrot.slane %v1005, %v1077
    %v1079 = vlaneseq
    %v1080 = vshrl.u32 %v1079, 7
    %v1081 = vsub.s32 6, %v1080
    %v1082 = vrot.slane %v1005, %v1081
    %v1083 = vlaneseq
    %v1084 = vshrl.u32 %v1083, 7
    %v1085 = vsub.s32 7, %v1084
    %v1086 = vrot.slane %v1005, %v1085
    %v1087 = vlaneseq
    %v1088 = vshrl.u32 %v1087, 7
    %v1089 = vsub.s32 0, %v1088
    %v1090 = vrot.slane %v1006, %v1089
    %v1091 = vlaneseq
    %v1092 = vshrl.u32 %v1091, 7
    %v1093 = vsub.s32 1, %v1092
    %v1094 = vrot.slane %v1006, %v1093
    %v1095 = vlaneseq
    %v1096 = vshrl.u32 %v1095, 7
    %v1097 = vsub.s32 2, %v1096
    %v1098 = vrot.slane %v1006, %v1097
    %v1099 = vlaneseq
    %v1100 = vshrl.u32 %v1099, 7
    %v1101 = vsub.s32 3, %v1100
    %v1102 = vrot.slane %v1006, %v1101
    %v1103 = vlaneseq
    %v1104 = vshrl.u32 %v1103, 7
    %v1105 = vsub.s32 4, %v1104
    %v1106 = vrot.slane %v1006, %v1105
    %v1107 = vlaneseq
    %v1108 = vshrl.u32 %v1107, 7
    %v1109 = vsub.s32 5, %v1108
    %v1110 = vrot.slane %v1006, %v1109
    %v1111 = vlaneseq
    %v1112 = vshrl.u32 %v1111, 7
    %v1113 = vsub.s32 6, %v1112
    %v1114 = vrot.slane %v1006, %v1113
    %v1115 = vlaneseq
    %v1116 = vshrl.u32 %v1115, 7
    %v1117 = vsub.s32 7, %v1116
    %v1118 = vrot.slane %v1006, %v1117
    %v1119 = vlaneseq
    %v1120 = vshrl.u32 %v1119, 7
    %v1121 = vsub.s32 0, %v1120
    %v1122 = vrot.slane %v1007, %v1121
    %v1123 = vlaneseq
    %v1124 = vshrl.u32 %v1123, 7
    %v1125 = vsub.s32 1, %v1124
    %v1126 = vrot.slane %v1007, %v1125
    %v1127 = vlaneseq
    %v1128 = vshrl.u32 %v1127, 7
    %v1129 = vsub.s32 2, %v1128
    %v1130 = vrot.slane %v1007, %v1129
    %v1131 = vlaneseq
    %v1132 = vshrl.u32 %v1131, 7
    %v1133 = vsub.s32 3, %v1132
    %v1134 = vrot.slane %v1007, %v1133
    %v1135 = vlaneseq
    %v1136 = vshrl.u32 %v1135, 7
    %v1137 = vsub.s32 4, %v1136
    %v1138 = vrot.slane %v1007, %v1137
    %v1139 = vlaneseq
    %v1140 = vshrl.u32 %v1139, 7
    %v1141 = vsub.s32 5, %v1140
    %v1142 = vrot.slane %v1007, %v1141
    %v1143 = vlaneseq
    %v1144 = vshrl.u32 %v1143, 7
    %v1145 = vsub.s32 6, %v1144
    %v1146 = vrot.slane %v1007, %v1145
    %v1147 = vlaneseq
    %v1148 = vshrl.u32 %v1147, 7
    %v1149 = vsub.s32 7, %v1148
    %v1150 = vrot.slane %v1007, %v1149
    %v1151 = vlaneseq
    %v1152 = vshrl.u32 %v1151, 7
    %v1153 = vsub.s32 0, %v1152
    %v1154 = vrot.slane %v1008, %v1153
    %v1155 = vlaneseq
    %v1156 = vshrl.u32 %v1155, 7
    %v1157 = vsub.s32 1, %v1156
    %v1158 = vrot.slane %v1008, %v1157
    %v1159 = vlaneseq
    %v1160 = vshrl.u32 %v1159, 7
    %v1161 = vsub.s32 2, %v1160
    %v1162 = vrot.slane %v1008, %v1161
    %v1163 = vlaneseq
    %v1164 = vshrl.u32 %v1163, 7
    %v1165 = vsub.s32 3, %v1164
    %v1166 = vrot.slane %v1008, %v1165
    %v1167 = vlaneseq
    %v1168 = vshrl.u32 %v1167, 7
    %v1169 = vsub.s32 4, %v1168
    %v1170 = vrot.slane %v1008, %v1169
    %v1171 = vlaneseq
    %v1172 = vshrl.u32 %v1171, 7
    %v1173 = vsub.s32 5, %v1172
    %v1174 = vrot.slane %v1008, %v1173
    %v1175 = vlaneseq
    %v1176 = vshrl.u32 %v1175, 7
    %v1177 = vsub.s32 6, %v1176
    %v1178 = vrot.slane %v1008, %v1177
    %v1179 = vlaneseq
    %v1180 = vshrl.u32 %v1179, 7
    %v1181 = vsub.s32 7, %v1180
    %v1182 = vrot.slane %v1008, %v1181
    %v1183 = vlaneseq
    %v1184 = vshrl.u32 %v1183, 7
    %v1185 = vsub.s32 0, %v1184
    %v1186 = vrot.slane %v1009, %v1185
    %v1187 = vlaneseq
    %v1188 = vshrl.u32 %v1187, 7
    %v1189 = vsub.s32 1, %v1188
    %v1190 = vrot.slane %v1009, %v1189
    %v1191 = vlaneseq
    %v1192 = vshrl.u32 %v1191, 7
    %v1193 = vsub.s32 2, %v1192
    %v1194 = vrot.slane %v1009, %v1193
    %v1195 = vlaneseq
    %v1196 = vshrl.u32 %v1195, 7
    %v1197 = vsub.s32 3, %v1196
    %v1198 = vrot.slane %v1009, %v1197
    %v1199 = vlaneseq
    %v1200 = vshrl.u32 %v1199, 7
    %v1201 = vsub.s32 4, %v1200
    %v1202 = vrot.slane %v1009, %v1201
    %v1203 = vlaneseq
    %v1204 = vshrl.u32 %v1203, 7
    %v1205 = vsub.s32 5, %v1204
    %v1206 = vrot.slane %v1009, %v1205
    %v1207 = vlaneseq
    %v1208 = vshrl.u32 %v1207, 7
    %v1209 = vsub.s32 6, %v1208
    %v1210 = vrot.slane %v1009, %v1209
    %v1211 = vlaneseq
    %v1212 = vshrl.u32 %v1211, 7
    %v1213 = vsub.s32 7, %v1212
    %v1214 = vrot.slane %v1009, %v1213
    %v1215 = vlaneseq
    %v1216 = vshrl.u32 %v1215, 7
    %v1217 = vsub.s32 0, %v1216
    %v1218 = vrot.slane %v1010, %v1217
    %v1219 = vlaneseq
    %v1220 = vshrl.u32 %v1219, 7
    %v1221 = vsub.s32 1, %v1220
    %v1222 = vrot.slane %v1010, %v1221
    %v1223 = vlaneseq
    %v1224 = vshrl.u32 %v1223, 7
    %v1225 = vsub.s32 2, %v1224
    %v1226 = vrot.slane %v1010, %v1225
    %v1227 = vlaneseq
    %v1228 = vshrl.u32 %v1227, 7
    %v1229 = vsub.s32 3, %v1228
    %v1230 = vrot.slane %v1010, %v1229
    %v1231 = vlaneseq
    %v1232 = vshrl.u32 %v1231, 7
    %v1233 = vsub.s32 4, %v1232
    %v1234 = vrot.slane %v1010, %v1233
    %v1235 = vlaneseq
    %v1236 = vshrl.u32 %v1235, 7
    %v1237 = vsub.s32 5, %v1236
    %v1238 = vrot.slane %v1010, %v1237
    %v1239 = vlaneseq
    %v1240 = vshrl.u32 %v1239, 7
    %v1241 = vsub.s32 6, %v1240
    %v1242 = vrot.slane %v1010, %v1241
    %v1243 = vlaneseq
    %v1244 = vshrl.u32 %v1243, 7
    %v1245 = vsub.s32 7, %v1244
    %v1246 = vrot.slane %v1010, %v1245
    %v1247 = vlaneseq
    %v1248 = vshrl.u32 %v1247, 7
    %v1249 = vsub.s32 0, %v1248
    %v1250 = vrot.slane %v1011, %v1249
    %v1251 = vlaneseq
    %v1252 = vshrl.u32 %v1251, 7
    %v1253 = vsub.s32 1, %v1252
    %v1254 = vrot.slane %v1011, %v1253
    %v1255 = vlaneseq
    %v1256 = vshrl.u32 %v1255, 7
    %v1257 = vsub.s32 2, %v1256
    %v1258 = vrot.slane %v1011, %v1257
    %v1259 = vlaneseq
    %v1260 = vshrl.u32 %v1259, 7
    %v1261 = vsub.s32 3, %v1260
    %v1262 = vrot.slane %v1011, %v1261
    %v1263 = vlaneseq
    %v1264 = vshrl.u32 %v1263, 7
    %v1265 = vsub.s32 4, %v1264
    %v1266 = vrot.slane %v1011, %v1265
    %v1267 = vlaneseq
    %v1268 = vshrl.u32 %v1267, 7
    %v1269 = vsub.s32 5, %v1268
    %v1270 = vrot.slane %v1011, %v1269
    %v1271 = vlaneseq
    %v1272 = vshrl.u32 %v1271, 7
    %v1273 = vsub.s32 6, %v1272
    %v1274 = vrot.slane %v1011, %v1273
    %v1275 = vlaneseq
    %v1276 = vshrl.u32 %v1275, 7
    %v1277 = vsub.s32 7, %v1276
    %v1278 = vrot.slane %v1011, %v1277
    %v1279 = vlaneseq
    %v1280 = vshrl.u32 %v1279, 7
    %v1281 = vsub.s32 0, %v1280
    %v1282 = vrot.slane %v1012, %v1281
    %v1283 = vlaneseq
    %v1284 = vshrl.u32 %v1283, 7
    %v1285 = vsub.s32 1, %v1284
    %v1286 = vrot.slane %v1012, %v1285
    %v1287 = vlaneseq
    %v1288 = vshrl.u32 %v1287, 7
    %v1289 = vsub.s32 2, %v1288
    %v1290 = vrot.slane %v1012, %v1289
    %v1291 = vlaneseq
    %v1292 = vshrl.u32 %v1291, 7
    %v1293 = vsub.s32 3, %v1292
    %v1294 = vrot.slane %v1012, %v1293
    %v1295 = vlaneseq
    %v1296 = vshrl.u32 %v1295, 7
    %v1297 = vsub.s32 4, %v1296
    %v1298 = vrot.slane %v1012, %v1297
    %v1299 = vlaneseq
    %v1300 = vshrl.u32 %v1299, 7
    %v1301 = vsub.s32 5, %v1300
    %v1302 = vrot.slane %v1012, %v1301
    %v1303 = vlaneseq
    %v1304 = vshrl.u32 %v1303, 7
    %v1305 = vsub.s32 6, %v1304
    %v1306 = vrot.slane %v1012, %v1305
    %v1307 = vlaneseq
    %v1308 = vshrl.u32 %v1307, 7
    %v1309 = vsub.s32 7, %v1308
    %v1310 = vrot.slane %v1012, %v1309
    %v1311 = vlaneseq
    %v1312 = vshrl.u32 %v1311, 7
    %v1313 = vsub.s32 0, %v1312
    %v1314 = vrot.slane %v1013, %v1313
    %v1315 = vlaneseq
    %v1316 = vshrl.u32 %v1315, 7
    %v1317 = vsub.s32 1, %v1316
    %v1318 = vrot.slane %v1013, %v1317
    %v1319 = vlaneseq
    %v1320 = vshrl.u32 %v1319, 7
    %v1321 = vsub.s32 2, %v1320
    %v1322 = vrot.slane %v1013, %v1321
    %v1323 = vlaneseq
    %v1324 = vshrl.u32 %v1323, 7
    %v1325 = vsub.s32 3, %v1324
    %v1326 = vrot.slane %v1013, %v1325
    %v1327 = vlaneseq
    %v1328 = vshrl.u32 %v1327, 7
    %v1329 = vsub.s32 4, %v1328
    %v1330 = vrot.slane %v1013, %v1329
    %v1331 = vlaneseq
    %v1332 = vshrl.u32 %v1331, 7
    %v1333 = vsub.s32 5, %v1332
    %v1334 = vrot.slane %v1013, %v1333
    %v1335 = vlaneseq
    %v1336 = vshrl.u32 %v1335, 7
    %v1337 = vsub.s32 6, %v1336
    %v1338 = vrot.slane %v1013, %v1337
    %v1339 = vlaneseq
    %v1340 = vshrl.u32 %v1339, 7
    %v1341 = vsub.s32 7, %v1340
    %v1342 = vrot.slane %v1013, %v1341
    %v1343 = vlaneseq
    %v1344 = vshrl.u32 %v1343, 7
    %v1345 = vsub.s32 0, %v1344
    %v1346 = vrot.slane %v1014, %v1345
    %v1347 = vlaneseq
    %v1348 = vshrl.u32 %v1347, 7
    %v1349 = vsub.s32 1, %v1348
    %v1350 = vrot.slane %v1014, %v1349
    %v1351 = vlaneseq
    %v1352 = vshrl.u32 %v1351, 7
    %v1353 = vsub.s32 2, %v1352
    %v1354 = vrot.slane %v1014, %v1353
    %v1355 = vlaneseq
    %v1356 = vshrl.u32 %v1355, 7
    %v1357 = vsub.s32 3, %v1356
    %v1358 = vrot.slane %v1014, %v1357
    %v1359 = vlaneseq
    %v1360 = vshrl.u32 %v1359, 7
    %v1361 = vsub.s32 4, %v1360
    %v1362 = vrot.slane %v1014, %v1361
    %v1363 = vlaneseq
    %v1364 = vshrl.u32 %v1363, 7
    %v1365 = vsub.s32 5, %v1364
    %v1366 = vrot.slane %v1014, %v1365
    %v1367 = vlaneseq
    %v1368 = vshrl.u32 %v1367, 7
    %v1369 = vsub.s32 6, %v1368
    %v1370 = vrot.slane %v1014, %v1369
    %v1371 = vlaneseq
    %v1372 = vshrl.u32 %v1371, 7
    %v1373 = vsub.s32 7, %v1372
    %v1374 = vrot.slane %v1014, %v1373
    %v1375 = vlaneseq
    %v1376 = vshrl.u32 %v1375, 7
    %v1377 = vsub.s32 0, %v1376
    %v1378 = vrot.slane %v1015, %v1377
    %v1379 = vlaneseq
    %v1380 = vshrl.u32 %v1379, 7
    %v1381 = vsub.s32 1, %v1380
    %v1382 = vrot.slane %v1015, %v1381
    %v1383 = vlaneseq
    %v1384 = vshrl.u32 %v1383, 7
    %v1385 = vsub.s32 2, %v1384
    %v1386 = vrot.slane %v1015, %v1385
    %v1387 = vlaneseq
    %v1388 = vshrl.u32 %v1387, 7
    %v1389 = vsub.s32 3, %v1388
    %v1390 = vrot.slane %v1015, %v1389
    %v1391 = vlaneseq
    %v1392 = vshrl.u32 %v1391, 7
    %v1393 = vsub.s32 4, %v1392
    %v1394 = vrot.slane %v1015, %v1393
    %v1395 = vlaneseq
    %v1396 = vshrl.u32 %v1395, 7
    %v1397 = vsub.s32 5, %v1396
    %v1398 = vrot.slane %v1015, %v1397
    %v1399 = vlaneseq
    %v1400 = vshrl.u32 %v1399, 7
    %v1401 = vsub.s32 6, %v1400
    %v1402 = vrot.slane %v1015, %v1401
    %v1403 = vlaneseq
    %v1404 = vshrl.u32 %v1403, 7
    %v1405 = vsub.s32 7, %v1404
    %v1406 = vrot.slane %v1015, %v1405
    %v1407 = vlaneseq
    %v1408 = vshrl.u32 %v1407, 7
    %v1409 = vsub.s32 0, %v1408
    %v1410 = vrot.slane %v1016, %v1409
    %v1411 = vlaneseq
    %v1412 = vshrl.u32 %v1411, 7
    %v1413 = vsub.s32 1, %v1412
    %v1414 = vrot.slane %v1016, %v1413
    %v1415 = vlaneseq
    %v1416 = vshrl.u32 %v1415, 7
    %v1417 = vsub.s32 2, %v1416
    %v1418 = vrot.slane %v1016, %v1417
    %v1419 = vlaneseq
    %v1420 = vshrl.u32 %v1419, 7
    %v1421 = vsub.s32 3, %v1420
    %v1422 = vrot.slane %v1016, %v1421
    %v1423 = vlaneseq
    %v1424 = vshrl.u32 %v1423, 7
    %v1425 = vsub.s32 4, %v1424
    %v1426 = vrot.slane %v1016, %v1425
    %v1427 = vlaneseq
    %v1428 = vshrl.u32 %v1427, 7
    %v1429 = vsub.s32 5, %v1428
    %v1430 = vrot.slane %v1016, %v1429
    %v1431 = vlaneseq
    %v1432 = vshrl.u32 %v1431, 7
    %v1433 = vsub.s32 6, %v1432
    %v1434 = vrot.slane %v1016, %v1433
    %v1435 = vlaneseq
    %v1436 = vshrl.u32 %v1435, 7
    %v1437 = vsub.s32 7, %v1436
    %v1438 = vrot.slane %v1016, %v1437
    %v1439 = vlaneseq
    %v1440 = vshrl.u32 %v1439, 7
    %v1441 = vsub.s32 0, %v1440
    %v1442 = vrot.slane %v1017, %v1441
    %v1443 = vlaneseq
    %v1444 = vshrl.u32 %v1443, 7
    %v1445 = vsub.s32 1, %v1444
    %v1446 = vrot.slane %v1017, %v1445
    %v1447 = vlaneseq
    %v1448 = vshrl.u32 %v1447, 7
    %v1449 = vsub.s32 2, %v1448
    %v1450 = vrot.slane %v1017, %v1449
    %v1451 = vlaneseq
    %v1452 = vshrl.u32 %v1451, 7
    %v1453 = vsub.s32 3, %v1452
    %v1454 = vrot.slane %v1017, %v1453
    %v1455 = vlaneseq
    %v1456 = vshrl.u32 %v1455, 7
    %v1457 = vsub.s32 4, %v1456
    %v1458 = vrot.slane %v1017, %v1457
    %v1459 = vlaneseq
    %v1460 = vshrl.u32 %v1459, 7
    %v1461 = vsub.s32 5, %v1460
    %v1462 = vrot.slane %v1017, %v1461
    %v1463 = vlaneseq
    %v1464 = vshrl.u32 %v1463, 7
    %v1465 = vsub.s32 6, %v1464
    %v1466 = vrot.slane %v1017, %v1465
    %v1467 = vlaneseq
    %v1468 = vshrl.u32 %v1467, 7
    %v1469 = vsub.s32 7, %v1468
    %v1470 = vrot.slane %v1017, %v1469
    %v1471 = vlaneseq
    %v1472 = vshrl.u32 %v1471, 7
    %v1473 = vsub.s32 0, %v1472
    %v1474 = vrot.slane %v1018, %v1473
    %v1475 = vlaneseq
    %v1476 = vshrl.u32 %v1475, 7
    %v1477 = vsub.s32 1, %v1476
    %v1478 = vrot.slane %v1018, %v1477
    %v1479 = vlaneseq
    %v1480 = vshrl.u32 %v1479, 7
    %v1481 = vsub.s32 2, %v1480
    %v1482 = vrot.slane %v1018, %v1481
    %v1483 = vlaneseq
    %v1484 = vshrl.u32 %v1483, 7
    %v1485 = vsub.s32 3, %v1484
    %v1486 = vrot.slane %v1018, %v1485
    %v1487 = vlaneseq
    %v1488 = vshrl.u32 %v1487, 7
    %v1489 = vsub.s32 4, %v1488
    %v1490 = vrot.slane %v1018, %v1489
    %v1491 = vlaneseq
    %v1492 = vshrl.u32 %v1491, 7
    %v1493 = vsub.s32 5, %v1492
    %v1494 = vrot.slane %v1018, %v1493
    %v1495 = vlaneseq
    %v1496 = vshrl.u32 %v1495, 7
    %v1497 = vsub.s32 6, %v1496
    %v1498 = vrot.slane %v1018, %v1497
    %v1499 = vlaneseq
    %v1500 = vshrl.u32 %v1499, 7
    %v1501 = vsub.s32 7, %v1500
    %v1502 = vrot.slane %v1018, %v1501
    %v1503 = vlaneseq
    %v1504 = vshrl.u32 %v1503, 7
    %v1505 = vsub.s32 0, %v1504
    %v1506 = vrot.slane %v1019, %v1505
    %v1507 = vlaneseq
    %v1508 = vshrl.u32 %v1507, 7
    %v1509 = vsub.s32 1, %v1508
    %v1510 = vrot.slane %v1019, %v1509
    %v1511 = vlaneseq
    %v1512 = vshrl.u32 %v1511, 7
    %v1513 = vsub.s32 2, %v1512
    %v1514 = vrot.slane %v1019, %v1513
    %v1515 = vlaneseq
    %v1516 = vshrl.u32 %v1515, 7
    %v1517 = vsub.s32 3, %v1516
    %v1518 = vrot.slane %v1019, %v1517
    %v1519 = vlaneseq
    %v1520 = vshrl.u32 %v1519, 7
    %v1521 = vsub.s32 4, %v1520
    %v1522 = vrot.slane %v1019, %v1521
    %v1523 = vlaneseq
    %v1524 = vshrl.u32 %v1523, 7
    %v1525 = vsub.s32 5, %v1524
    %v1526 = vrot.slane %v1019, %v1525
    %v1527 = vlaneseq
    %v1528 = vshrl.u32 %v1527, 7
    %v1529 = vsub.s32 6, %v1528
    %v1530 = vrot.slane %v1019, %v1529
    %v1531 = vlaneseq
    %v1532 = vshrl.u32 %v1531, 7
    %v1533 = vsub.s32 7, %v1532
    %v1534 = vrot.slane %v1019, %v1533
    %v1535 = vlaneseq
    %v1536 = vshrl.u32 %v1535, 7
    %v1537 = vsub.s32 0, %v1536
    %v1538 = vrot.slane %v1020, %v1537
    %v1539 = vlaneseq
    %v1540 = vshrl.u32 %v1539, 7
    %v1541 = vsub.s32 1, %v1540
    %v1542 = vrot.slane %v1020, %v1541
    %v1543 = vlaneseq
    %v1544 = vshrl.u32 %v1543, 7
    %v1545 = vsub.s32 2, %v1544
    %v1546 = vrot.slane %v1020, %v1545
    %v1547 = vlaneseq
    %v1548 = vshrl.u32 %v1547, 7
    %v1549 = vsub.s32 3, %v1548
    %v1550 = vrot.slane %v1020, %v1549
    %v1551 = vlaneseq
    %v1552 = vshrl.u32 %v1551, 7
    %v1553 = vsub.s32 4, %v1552
    %v1554 = vrot.slane %v1020, %v1553
    %v1555 = vlaneseq
    %v1556 = vshrl.u32 %v1555, 7
    %v1557 = vsub.s32 5, %v1556
    %v1558 = vrot.slane %v1020, %v1557
    %v1559 = vlaneseq
    %v1560 = vshrl.u32 %v1559, 7
    %v1561 = vsub.s32 6, %v1560
    %v1562 = vrot.slane %v1020, %v1561
    %v1563 = vlaneseq
    %v1564 = vshrl.u32 %v1563, 7
    %v1565 = vsub.s32 7, %v1564
    %v1566 = vrot.slane %v1020, %v1565
    %v1567 = vlaneseq
    %v1568 = vshrl.u32 %v1567, 7
    %v1569 = vsub.s32 0, %v1568
    %v1570 = vrot.slane %v1021, %v1569
    %v1571 = vlaneseq
    %v1572 = vshrl.u32 %v1571, 7
    %v1573 = vsub.s32 1, %v1572
    %v1574 = vrot.slane %v1021, %v1573
    %v1575 = vlaneseq
    %v1576 = vshrl.u32 %v1575, 7
    %v1577 = vsub.s32 2, %v1576
    %v1578 = vrot.slane %v1021, %v1577
    %v1579 = vlaneseq
    %v1580 = vshrl.u32 %v1579, 7
    %v1581 = vsub.s32 3, %v1580
    %v1582 = vrot.slane %v1021, %v1581
    %v1583 = vlaneseq
    %v1584 = vshrl.u32 %v1583, 7
    %v1585 = vsub.s32 4, %v1584
    %v1586 = vrot.slane %v1021, %v1585
    %v1587 = vlaneseq
    %v1588 = vshrl.u32 %v1587, 7
    %v1589 = vsub.s32 5, %v1588
    %v1590 = vrot.slane %v1021, %v1589
    %v1591 = vlaneseq
    %v1592 = vshrl.u32 %v1591, 7
    %v1593 = vsub.s32 6, %v1592
    %v1594 = vrot.slane %v1021, %v1593
    %v1595 = vlaneseq
    %v1596 = vshrl.u32 %v1595, 7
    %v1597 = vsub.s32 7, %v1596
    %v1598 = vrot.slane %v1021, %v1597
    %v1599 = vlaneseq
    %v1600 = vshrl.u32 %v1599, 7
    %v1601 = vsub.s32 0, %v1600
    %v1602 = vrot.slane %v1022, %v1601
    %v1603 = vlaneseq
    %v1604 = vshrl.u32 %v1603, 7
    %v1605 = vsub.s32 1, %v1604
    %v1606 = vrot.slane %v1022, %v1605
    %v1607 = vlaneseq
    %v1608 = vshrl.u32 %v1607, 7
    %v1609 = vsub.s32 2, %v1608
    %v1610 = vrot.slane %v1022, %v1609
    %v1611 = vlaneseq
    %v1612 = vshrl.u32 %v1611, 7
    %v1613 = vsub.s32 3, %v1612
    %v1614 = vrot.slane %v1022, %v1613
    %v1615 = vlaneseq
    %v1616 = vshrl.u32 %v1615, 7
    %v1617 = vsub.s32 4, %v1616
    %v1618 = vrot.slane %v1022, %v1617
    %v1619 = vlaneseq
    %v1620 = vshrl.u32 %v1619, 7
    %v1621 = vsub.s32 5, %v1620
    %v1622 = vrot.slane %v1022, %v1621
    %v1623 = vlaneseq
    %v1624 = vshrl.u32 %v1623, 7
    %v1625 = vsub.s32 6, %v1624
    %v1626 = vrot.slane %v1022, %v1625
    %v1627 = vlaneseq
    %v1628 = vshrl.u32 %v1627, 7
    %v1629 = vsub.s32 7, %v1628
    %v1630 = vrot.slane %v1022, %v1629
    %v1631 = vlaneseq
    %v1632 = vshrl.u32 %v1631, 7
    %v1633 = vsub.s32 0, %v1632
    %v1634 = vrot.slane %v1023, %v1633
    %v1635 = vlaneseq
    %v1636 = vshrl.u32 %v1635, 7
    %v1637 = vsub.s32 1, %v1636
    %v1638 = vrot.slane %v1023, %v1637
    %v1639 = vlaneseq
    %v1640 = vshrl.u32 %v1639, 7
    %v1641 = vsub.s32 2, %v1640
    %v1642 = vrot.slane %v1023, %v1641
    %v1643 = vlaneseq
    %v1644 = vshrl.u32 %v1643, 7
    %v1645 = vsub.s32 3, %v1644
    %v1646 = vrot.slane %v1023, %v1645
    %v1647 = vlaneseq
    %v1648 = vshrl.u32 %v1647, 7
    %v1649 = vsub.s32 4, %v1648
    %v1650 = vrot.slane %v1023, %v1649
    %v1651 = vlaneseq
    %v1652 = vshrl.u32 %v1651, 7
    %v1653 = vsub.s32 5, %v1652
    %v1654 = vrot.slane %v1023, %v1653
    %v1655 = vlaneseq
    %v1656 = vshrl.u32 %v1655, 7
    %v1657 = vsub.s32 6, %v1656
    %v1658 = vrot.slane %v1023, %v1657
    %v1659 = vlaneseq
    %v1660 = vshrl.u32 %v1659, 7
    %v1661 = vsub.s32 7, %v1660
    %v1662 = vrot.slane %v1023, %v1661
    %v1663 = vlaneseq
    %v1664 = vshrl.u32 %v1663, 7
    %v1665 = vsub.s32 0, %v1664
    %v1666 = vrot.slane %v1024, %v1665
    %v1667 = vlaneseq
    %v1668 = vshrl.u32 %v1667, 7
    %v1669 = vsub.s32 1, %v1668
    %v1670 = vrot.slane %v1024, %v1669
    %v1671 = vlaneseq
    %v1672 = vshrl.u32 %v1671, 7
    %v1673 = vsub.s32 2, %v1672
    %v1674 = vrot.slane %v1024, %v1673
    %v1675 = vlaneseq
    %v1676 = vshrl.u32 %v1675, 7
    %v1677 = vsub.s32 3, %v1676
    %v1678 = vrot.slane %v1024, %v1677
    %v1679 = vlaneseq
    %v1680 = vshrl.u32 %v1679, 7
    %v1681 = vsub.s32 4, %v1680
    %v1682 = vrot.slane %v1024, %v1681
    %v1683 = vlaneseq
    %v1684 = vshrl.u32 %v1683, 7
    %v1685 = vsub.s32 5, %v1684
    %v1686 = vrot.slane %v1024, %v1685
    %v1687 = vlaneseq
    %v1688 = vshrl.u32 %v1687, 7
    %v1689 = vsub.s32 6, %v1688
    %v1690 = vrot.slane %v1024, %v1689
    %v1691 = vlaneseq
    %v1692 = vshrl.u32 %v1691, 7
    %v1693 = vsub.s32 7, %v1692
    %v1694 = vrot.slane %v1024, %v1693
    %v1695 = vlaneseq
    %v1696 = vshrl.u32 %v1695, 7
    %v1697 = vsub.s32 0, %v1696
    %v1698 = vrot.slane %v1025, %v1697
    %v1699 = vlaneseq
    %v1700 = vshrl.u32 %v1699, 7
    %v1701 = vsub.s32 1, %v1700
    %v1702 = vrot.slane %v1025, %v1701
    %v1703 = vlaneseq
    %v1704 = vshrl.u32 %v1703, 7
    %v1705 = vsub.s32 2, %v1704
    %v1706 = vrot.slane %v1025, %v1705
    %v1707 = vlaneseq
    %v1708 = vshrl.u32 %v1707, 7
    %v1709 = vsub.s32 3, %v1708
    %v1710 = vrot.slane %v1025, %v1709
    %v1711 = vlaneseq
    %v1712 = vshrl.u32 %v1711, 7
    %v1713 = vsub.s32 4, %v1712
    %v1714 = vrot.slane %v1025, %v1713
    %v1715 = vlaneseq
    %v1716 = vshrl.u32 %v1715, 7
    %v1717 = vsub.s32 5, %v1716
    %v1718 = vrot.slane %v1025, %v1717
    %v1719 = vlaneseq
    %v1720 = vshrl.u32 %v1719, 7
    %v1721 = vsub.s32 6, %v1720
    %v1722 = vrot.slane %v1025, %v1721
    %v1723 = vlaneseq
    %v1724 = vshrl.u32 %v1723, 7
    %v1725 = vsub.s32 7, %v1724
    %v1726 = vrot.slane %v1025, %v1725
    %v1727 = vlaneseq
    %v1728 = vshrl.u32 %v1727, 7
    %v1729 = vsub.s32 0, %v1728
    %v1730 = vrot.slane %v1026, %v1729
    %v1731 = vlaneseq
    %v1732 = vshrl.u32 %v1731, 7
    %v1733 = vsub.s32 1, %v1732
    %v1734 = vrot.slane %v1026, %v1733
    %v1735 = vlaneseq
    %v1736 = vshrl.u32 %v1735, 7
    %v1737 = vsub.s32 2, %v1736
    %v1738 = vrot.slane %v1026, %v1737
    %v1739 = vlaneseq
    %v1740 = vshrl.u32 %v1739, 7
    %v1741 = vsub.s32 3, %v1740
    %v1742 = vrot.slane %v1026, %v1741
    %v1743 = vlaneseq
    %v1744 = vshrl.u32 %v1743, 7
    %v1745 = vsub.s32 4, %v1744
    %v1746 = vrot.slane %v1026, %v1745
    %v1747 = vlaneseq
    %v1748 = vshrl.u32 %v1747, 7
    %v1749 = vsub.s32 5, %v1748
    %v1750 = vrot.slane %v1026, %v1749
    %v1751 = vlaneseq
    %v1752 = vshrl.u32 %v1751, 7
    %v1753 = vsub.s32 6, %v1752
    %v1754 = vrot.slane %v1026, %v1753
    %v1755 = vlaneseq
    %v1756 = vshrl.u32 %v1755, 7
    %v1757 = vsub.s32 7, %v1756
    %v1758 = vrot.slane %v1026, %v1757
    %v1759 = vlaneseq
    %v1760 = vshrl.u32 %v1759, 7
    %v1761 = vsub.s32 0, %v1760
    %v1762 = vrot.slane %v1027, %v1761
    %v1763 = vlaneseq
    %v1764 = vshrl.u32 %v1763, 7
    %v1765 = vsub.s32 1, %v1764
    %v1766 = vrot.slane %v1027, %v1765
    %v1767 = vlaneseq
    %v1768 = vshrl.u32 %v1767, 7
    %v1769 = vsub.s32 2, %v1768
    %v1770 = vrot.slane %v1027, %v1769
    %v1771 = vlaneseq
    %v1772 = vshrl.u32 %v1771, 7
    %v1773 = vsub.s32 3, %v1772
    %v1774 = vrot.slane %v1027, %v1773
    %v1775 = vlaneseq
    %v1776 = vshrl.u32 %v1775, 7
    %v1777 = vsub.s32 4, %v1776
    %v1778 = vrot.slane %v1027, %v1777
    %v1779 = vlaneseq
    %v1780 = vshrl.u32 %v1779, 7
    %v1781 = vsub.s32 5, %v1780
    %v1782 = vrot.slane %v1027, %v1781
    %v1783 = vlaneseq
    %v1784 = vshrl.u32 %v1783, 7
    %v1785 = vsub.s32 6, %v1784
    %v1786 = vrot.slane %v1027, %v1785
    %v1787 = vlaneseq
    %v1788 = vshrl.u32 %v1787, 7
    %v1789 = vsub.s32 7, %v1788
    %v1790 = vrot.slane %v1027, %v1789
    %v1791 = vlaneseq
    %v1792 = vshrl.u32 %v1791, 7
    %v1793 = vsub.s32 0, %v1792
    %v1794 = vrot.slane %v1028, %v1793
    %v1795 = vlaneseq
    %v1796 = vshrl.u32 %v1795, 7
    %v1797 = vsub.s32 1, %v1796
    %v1798 = vrot.slane %v1028, %v1797
    %v1799 = vlaneseq
    %v1800 = vshrl.u32 %v1799, 7
    %v1801 = vsub.s32 2, %v1800
    %v1802 = vrot.slane %v1028, %v1801
    %v1803 = vlaneseq
    %v1804 = vshrl.u32 %v1803, 7
    %v1805 = vsub.s32 3, %v1804
    %v1806 = vrot.slane %v1028, %v1805
    %v1807 = vlaneseq
    %v1808 = vshrl.u32 %v1807, 7
    %v1809 = vsub.s32 4, %v1808
    %v1810 = vrot.slane %v1028, %v1809
    %v1811 = vlaneseq
    %v1812 = vshrl.u32 %v1811, 7
    %v1813 = vsub.s32 5, %v1812
    %v1814 = vrot.slane %v1028, %v1813
    %v1815 = vlaneseq
    %v1816 = vshrl.u32 %v1815, 7
    %v1817 = vsub.s32 6, %v1816
    %v1818 = vrot.slane %v1028, %v1817
    %v1819 = vlaneseq
    %v1820 = vshrl.u32 %v1819, 7
    %v1821 = vsub.s32 7, %v1820
    %v1822 = vrot.slane %v1028, %v1821
    %v1823 = vlaneseq
    %v1824 = vshrl.u32 %v1823, 7
    %v1825 = vsub.s32 0, %v1824
    %v1826 = vrot.slane %v1029, %v1825
    %v1827 = vlaneseq
    %v1828 = vshrl.u32 %v1827, 7
    %v1829 = vsub.s32 1, %v1828
    %v1830 = vrot.slane %v1029, %v1829
    %v1831 = vlaneseq
    %v1832 = vshrl.u32 %v1831, 7
    %v1833 = vsub.s32 2, %v1832
    %v1834 = vrot.slane %v1029, %v1833
    %v1835 = vlaneseq
    %v1836 = vshrl.u32 %v1835, 7
    %v1837 = vsub.s32 3, %v1836
    %v1838 = vrot.slane %v1029, %v1837
    %v1839 = vlaneseq
    %v1840 = vshrl.u32 %v1839, 7
    %v1841 = vsub.s32 4, %v1840
    %v1842 = vrot.slane %v1029, %v1841
    %v1843 = vlaneseq
    %v1844 = vshrl.u32 %v1843, 7
    %v1845 = vsub.s32 5, %v1844
    %v1846 = vrot.slane %v1029, %v1845
    %v1847 = vlaneseq
    %v1848 = vshrl.u32 %v1847, 7
    %v1849 = vsub.s32 6, %v1848
    %v1850 = vrot.slane %v1029, %v1849
    %v1851 = vlaneseq
    %v1852 = vshrl.u32 %v1851, 7
    %v1853 = vsub.s32 7, %v1852
    %v1854 = vrot.slane %v1029, %v1853
    %v1855 = vcombine.low %v1058, %v1062
    %v1856 = vcombine.low %v1066, %v1070
    %v1857 = vcombine.low %v1074, %v1078
    %v1858 = vcombine.low %v1082, %v1086
    %v1860 = vunpack.c.l.s4 1966171168
    %v1861 = vunpack.c.0.s8 %v1860
    %v1862 = vlaneseq
    %v1863 = vshrl.u32 %v1862, 7
    %v1864 = vsub.s32 %v1861, %v1863
    %v1865 = vrot.slane %v1855, %v1864
    %v1867 = vunpack.c.l.s4 1966171168
    %v1868 = vunpack.c.0.s8 %v1867
    %v1869 = vlaneseq
    %v1870 = vshrl.u32 %v1869, 7
    %v1871 = vsub.s32 %v1868, %v1870
    %v1872 = vrot.slane %v1856, %v1871
    %v1874 = vunpack.c.l.s4 1966171168
    %v1875 = vunpack.c.0.s8 %v1874
    %v1876 = vlaneseq
    %v1877 = vshrl.u32 %v1876, 7
    %v1878 = vsub.s32 %v1875, %v1877
    %v1879 = vrot.slane %v1857, %v1878
    %v1881 = vunpack.c.l.s4 1966171168
    %v1882 = vunpack.c.0.s8 %v1881
    %v1883 = vlaneseq
    %v1884 = vshrl.u32 %v1883, 7
    %v1885 = vsub.s32 %v1882, %v1884
    %v1886 = vrot.slane %v1858, %v1885
    %v1887 = vcombine.low %v1865, %v1872
    %v1888 = vcombine.low %v1879, %v1886
    %v1890 = vunpack.c.l.s4 1966171168
    %v1891 = vunpack.c.0.s8 %v1890
    %v1892 = vlaneseq
    %v1893 = vshrl.u32 %v1892, 7
    %v1894 = vsub.s32 %v1891, %v1893
    %v1895 = vrot.slane %v1887, %v1894
    %v1897 = vunpack.c.l.s4 1966171168
    %v1898 = vunpack.c.0.s8 %v1897
    %v1899 = vlaneseq
    %v1900 = vshrl.u32 %v1899, 7
    %v1901 = vsub.s32 %v1898, %v1900
    %v1902 = vrot.slane %v1888, %v1901
    %v1903 = vcombine.low %v1895, %v1902
    %v1904 = vcombine.low %v1090, %v1094
    %v1905 = vcombine.low %v1098, %v1102
    %v1906 = vcombine.low %v1106, %v1110
    %v1907 = vcombine.low %v1114, %v1118
    %v1909 = vunpack.c.l.s4 1966171168
    %v1910 = vunpack.c.0.s8 %v1909
    %v1911 = vlaneseq
    %v1912 = vshrl.u32 %v1911, 7
    %v1913 = vsub.s32 %v1910, %v1912
    %v1914 = vrot.slane %v1904, %v1913
    %v1916 = vunpack.c.l.s4 1966171168
    %v1917 = vunpack.c.0.s8 %v1916
    %v1918 = vlaneseq
    %v1919 = vshrl.u32 %v1918, 7
    %v1920 = vsub.s32 %v1917, %v1919
    %v1921 = vrot.slane %v1905, %v1920
    %v1923 = vunpack.c.l.s4 1966171168
    %v1924 = vunpack.c.0.s8 %v1923
    %v1925 = vlaneseq
    %v1926 = vshrl.u32 %v1925, 7
    %v1927 = vsub.s32 %v1924, %v1926
    %v1928 = vrot.slane %v1906, %v1927
    %v1930 = vunpack.c.l.s4 1966171168
    %v1931 = vunpack.c.0.s8 %v1930
    %v1932 = vlaneseq
    %v1933 = vshrl.u32 %v1932, 7
    %v1934 = vsub.s32 %v1931, %v1933
    %v1935 = vrot.slane %v1907, %v1934
    %v1936 = vcombine.low %v1914, %v1921
    %v1937 = vcombine.low %v1928, %v1935
    %v1939 = vunpack.c.l.s4 1966171168
    %v1940 = vunpack.c.0.s8 %v1939
    %v1941 = vlaneseq
    %v1942 = vshrl.u32 %v1941, 7
    %v1943 = vsub.s32 %v1940, %v1942
    %v1944 = vrot.slane %v1936, %v1943
    %v1946 = vunpack.c.l.s4 1966171168
    %v1947 = vunpack.c.0.s8 %v1946
    %v1948 = vlaneseq
    %v1949 = vshrl.u32 %v1948, 7
    %v1950 = vsub.s32 %v1947, %v1949
    %v1951 = vrot.slane %v1937, %v1950
    %v1952 = vcombine.low %v1944, %v1951
    %v1953 = vcombine.low %v1122, %v1126
    %v1954 = vcombine.low %v1130, %v1134
    %v1955 = vcombine.low %v1138, %v1142
    %v1956 = vcombine.low %v1146, %v1150
    %v1958 = vunpack.c.l.s4 1966171168
    %v1959 = vunpack.c.0.s8 %v1958
    %v1960 = vlaneseq
    %v1961 = vshrl.u32 %v1960, 7
    %v1962 = vsub.s32 %v1959, %v1961
    %v1963 = vrot.slane %v1953, %v1962
    %v1965 = vunpack.c.l.s4 1966171168
    %v1966 = vunpack.c.0.s8 %v1965
    %v1967 = vlaneseq
    %v1968 = vshrl.u32 %v1967, 7
    %v1969 = vsub.s32 %v1966, %v1968
    %v1970 = vrot.slane %v1954, %v1969
    %v1972 = vunpack.c.l.s4 1966171168
    %v1973 = vunpack.c.0.s8 %v1972
    %v1974 = vlaneseq
    %v1975 = vshrl.u32 %v1974, 7
    %v1976 = vsub.s32 %v1973, %v1975
    %v1977 = vrot.slane %v1955, %v1976
    %v1979 = vunpack.c.l.s4 1966171168
    %v1980 = vunpack.c.0.s8 %v1979
    %v1981 = vlaneseq
    %v1982 = vshrl.u32 %v1981, 7
    %v1983 = vsub.s32 %v1980, %v1982
    %v1984 = vrot.slane %v1956, %v1983
    %v1985 = vcombine.low %v1963, %v1970
    %v1986 = vcombine.low %v1977, %v1984
    %v1988 = vunpack.c.l.s4 1966171168
    %v1989 = vunpack.c.0.s8 %v1988
    %v1990 = vlaneseq
    %v1991 = vshrl.u32 %v1990, 7
    %v1992 = vsub.s32 %v1989, %v1991
    %v1993 = vrot.slane %v1985, %v1992
    %v1995 = vunpack.c.l.s4 1966171168
    %v1996 = vunpack.c.0.s8 %v1995
    %v1997 = vlaneseq
    %v1998 = vshrl.u32 %v1997, 7
    %v1999 = vsub.s32 %v1996, %v1998
    %v2000 = vrot.slane %v1986, %v1999
    %v2001 = vcombine.low %v1993, %v2000
    %v2002 = vcombine.low %v1154, %v1158
    %v2003 = vcombine.low %v1162, %v1166
    %v2004 = vcombine.low %v1170, %v1174
    %v2005 = vcombine.low %v1178, %v1182
    %v2007 = vunpack.c.l.s4 1966171168
    %v2008 = vunpack.c.0.s8 %v2007
    %v2009 = vlaneseq
    %v2010 = vshrl.u32 %v2009, 7
    %v2011 = vsub.s32 %v2008, %v2010
    %v2012 = vrot.slane %v2002, %v2011
    %v2014 = vunpack.c.l.s4 1966171168
    %v2015 = vunpack.c.0.s8 %v2014
    %v2016 = vlaneseq
    %v2017 = vshrl.u32 %v2016, 7
    %v2018 = vsub.s32 %v2015, %v2017
    %v2019 = vrot.slane %v2003, %v2018
    %v2021 = vunpack.c.l.s4 1966171168
    %v2022 = vunpack.c.0.s8 %v2021
    %v2023 = vlaneseq
    %v2024 = vshrl.u32 %v2023, 7
    %v2025 = vsub.s32 %v2022, %v2024
    %v2026 = vrot.slane %v2004, %v2025
    %v2028 = vunpack.c.l.s4 1966171168
    %v2029 = vunpack.c.0.s8 %v2028
    %v2030 = vlaneseq
    %v2031 = vshrl.u32 %v2030, 7
    %v2032 = vsub.s32 %v2029, %v2031
    %v2033 = vrot.slane %v2005, %v2032
    %v2034 = vcombine.low %v2012, %v2019
    %v2035 = vcombine.low %v2026, %v2033
    %v2037 = vunpack.c.l.s4 1966171168
    %v2038 = vunpack.c.0.s8 %v2037
    %v2039 = vlaneseq
    %v2040 = vshrl.u32 %v2039, 7
    %v2041 = vsub.s32 %v2038, %v2040
    %v2042 = vrot.slane %v2034, %v2041
    %v2044 = vunpack.c.l.s4 1966171168
    %v2045 = vunpack.c.0.s8 %v2044
    %v2046 = vlaneseq
    %v2047 = vshrl.u32 %v2046, 7
    %v2048 = vsub.s32 %v2045, %v2047
    %v2049 = vrot.slane %v2035, %v2048
    %v2050 = vcombine.low %v2042, %v2049
    %v2051 = vcombine.low %v1186, %v1190
    %v2052 = vcombine.low %v1194, %v1198
    %v2053 = vcombine.low %v1202, %v1206
    %v2054 = vcombine.low %v1210, %v1214
    %v2056 = vunpack.c.l.s4 1966171168
    %v2057 = vunpack.c.0.s8 %v2056
    %v2058 = vlaneseq
    %v2059 = vshrl.u32 %v2058, 7
    %v2060 = vsub.s32 %v2057, %v2059
    %v2061 = vrot.slane %v2051, %v2060
    %v2063 = vunpack.c.l.s4 1966171168
    %v2064 = vunpack.c.0.s8 %v2063
    %v2065 = vlaneseq
    %v2066 = vshrl.u32 %v2065, 7
    %v2067 = vsub.s32 %v2064, %v2066
    %v2068 = vrot.slane %v2052, %v2067
    %v2070 = vunpack.c.l.s4 1966171168
    %v2071 = vunpack.c.0.s8 %v2070
    %v2072 = vlaneseq
    %v2073 = vshrl.u32 %v2072, 7
    %v2074 = vsub.s32 %v2071, %v2073
    %v2075 = vrot.slane %v2053, %v2074
    %v2077 = vunpack.c.l.s4 1966171168
    %v2078 = vunpack.c.0.s8 %v2077
    %v2079 = vlaneseq
    %v2080 = vshrl.u32 %v2079, 7
    %v2081 = vsub.s32 %v2078, %v2080
    %v2082 = vrot.slane %v2054, %v2081
    %v2083 = vcombine.low %v2061, %v2068
    %v2084 = vcombine.low %v2075, %v2082
    %v2086 = vunpack.c.l.s4 1966171168
    %v2087 = vunpack.c.0.s8 %v2086
    %v2088 = vlaneseq
    %v2089 = vshrl.u32 %v2088, 7
    %v2090 = vsub.s32 %v2087, %v2089
    %v2091 = vrot.slane %v2083, %v2090
    %v2093 = vunpack.c.l.s4 1966171168
    %v2094 = vunpack.c.0.s8 %v2093
    %v2095 = vlaneseq
    %v2096 = vshrl.u32 %v2095, 7
    %v2097 = vsub.s32 %v2094, %v2096
    %v2098 = vrot.slane %v2084, %v2097
    %v2099 = vcombine.low %v2091, %v2098
    %v2100 = vcombine.low %v1218, %v1222
    %v2101 = vcombine.low %v1226, %v1230
    %v2102 = vcombine.low %v1234, %v1238
    %v2103 = vcombine.low %v1242, %v1246
    %v2105 = vunpack.c.l.s4 1966171168
    %v2106 = vunpack.c.0.s8 %v2105
    %v2107 = vlaneseq
    %v2108 = vshrl.u32 %v2107, 7
    %v2109 = vsub.s32 %v2106, %v2108
    %v2110 = vrot.slane %v2100, %v2109
    %v2112 = vunpack.c.l.s4 1966171168
    %v2113 = vunpack.c.0.s8 %v2112
    %v2114 = vlaneseq
    %v2115 = vshrl.u32 %v2114, 7
    %v2116 = vsub.s32 %v2113, %v2115
    %v2117 = vrot.slane %v2101, %v2116
    %v2119 = vunpack.c.l.s4 1966171168
    %v2120 = vunpack.c.0.s8 %v2119
    %v2121 = vlaneseq
    %v2122 = vshrl.u32 %v2121, 7
    %v2123 = vsub.s32 %v2120, %v2122
    %v2124 = vrot.slane %v2102, %v2123
    %v2126 = vunpack.c.l.s4 1966171168
    %v2127 = vunpack.c.0.s8 %v2126
    %v2128 = vlaneseq
    %v2129 = vshrl.u32 %v2128, 7
    %v2130 = vsub.s32 %v2127, %v2129
    %v2131 = vrot.slane %v2103, %v2130
    %v2132 = vcombine.low %v2110, %v2117
    %v2133 = vcombine.low %v2124, %v2131
    %v2135 = vunpack.c.l.s4 1966171168
    %v2136 = vunpack.c.0.s8 %v2135
    %v2137 = vlaneseq
    %v2138 = vshrl.u32 %v2137, 7
    %v2139 = vsub.s32 %v2136, %v2138
    %v2140 = vrot.slane %v2132, %v2139
    %v2142 = vunpack.c.l.s4 1966171168
    %v2143 = vunpack.c.0.s8 %v2142
    %v2144 = vlaneseq
    %v2145 = vshrl.u32 %v2144, 7
    %v2146 = vsub.s32 %v2143, %v2145
    %v2147 = vrot.slane %v2133, %v2146
    %v2148 = vcombine.low %v2140, %v2147
    %v2149 = vcombine.low %v1250, %v1254
    %v2150 = vcombine.low %v1258, %v1262
    %v2151 = vcombine.low %v1266, %v1270
    %v2152 = vcombine.low %v1274, %v1278
    %v2154 = vunpack.c.l.s4 1966171168
    %v2155 = vunpack.c.0.s8 %v2154
    %v2156 = vlaneseq
    %v2157 = vshrl.u32 %v2156, 7
    %v2158 = vsub.s32 %v2155, %v2157
    %v2159 = vrot.slane %v2149, %v2158
    %v2161 = vunpack.c.l.s4 1966171168
    %v2162 = vunpack.c.0.s8 %v2161
    %v2163 = vlaneseq
    %v2164 = vshrl.u32 %v2163, 7
    %v2165 = vsub.s32 %v2162, %v2164
    %v2166 = vrot.slane %v2150, %v2165
    %v2168 = vunpack.c.l.s4 1966171168
    %v2169 = vunpack.c.0.s8 %v2168
    %v2170 = vlaneseq
    %v2171 = vshrl.u32 %v2170, 7
    %v2172 = vsub.s32 %v2169, %v2171
    %v2173 = vrot.slane %v2151, %v2172
    %v2175 = vunpack.c.l.s4 1966171168
    %v2176 = vunpack.c.0.s8 %v2175
    %v2177 = vlaneseq
    %v2178 = vshrl.u32 %v2177, 7
    %v2179 = vsub.s32 %v2176, %v2178
    %v2180 = vrot.slane %v2152, %v2179
    %v2181 = vcombine.low %v2159, %v2166
    %v2182 = vcombine.low %v2173, %v2180
    %v2184 = vunpack.c.l.s4 1966171168
    %v2185 = vunpack.c.0.s8 %v2184
    %v2186 = vlaneseq
    %v2187 = vshrl.u32 %v2186, 7
    %v2188 = vsub.s32 %v2185, %v2187
    %v2189 = vrot.slane %v2181, %v2188
    %v2191 = vunpack.c.l.s4 1966171168
    %v2192 = vunpack.c.0.s8 %v2191
    %v2193 = vlaneseq
    %v2194 = vshrl.u32 %v2193, 7
    %v2195 = vsub.s32 %v2192, %v2194
    %v2196 = vrot.slane %v2182, %v2195
    %v2197 = vcombine.low %v2189, %v2196
    %v2198 = vcombine.low %v1282, %v1286
    %v2199 = vcombine.low %v1290, %v1294
    %v2200 = vcombine.low %v1298, %v1302
    %v2201 = vcombine.low %v1306, %v1310
    %v2203 = vunpack.c.l.s4 1966171168
    %v2204 = vunpack.c.0.s8 %v2203
    %v2205 = vlaneseq
    %v2206 = vshrl.u32 %v2205, 7
    %v2207 = vsub.s32 %v2204, %v2206
    %v2208 = vrot.slane %v2198, %v2207
    %v2210 = vunpack.c.l.s4 1966171168
    %v2211 = vunpack.c.0.s8 %v2210
    %v2212 = vlaneseq
    %v2213 = vshrl.u32 %v2212, 7
    %v2214 = vsub.s32 %v2211, %v2213
    %v2215 = vrot.slane %v2199, %v2214
    %v2217 = vunpack.c.l.s4 1966171168
    %v2218 = vunpack.c.0.s8 %v2217
    %v2219 = vlaneseq
    %v2220 = vshrl.u32 %v2219, 7
    %v2221 = vsub.s32 %v2218, %v2220
    %v2222 = vrot.slane %v2200, %v2221
    %v2224 = vunpack.c.l.s4 1966171168
    %v2225 = vunpack.c.0.s8 %v2224
    %v2226 = vlaneseq
    %v2227 = vshrl.u32 %v2226, 7
    %v2228 = vsub.s32 %v2225, %v2227
    %v2229 = vrot.slane %v2201, %v2228
    %v2230 = vcombine.low %v2208, %v2215
    %v2231 = vcombine.low %v2222, %v2229
    %v2233 = vunpack.c.l.s4 1966171168
    %v2234 = vunpack.c.0.s8 %v2233
    %v2235 = vlaneseq
    %v2236 = vshrl.u32 %v2235, 7
    %v2237 = vsub.s32 %v2234, %v2236
    %v2238 = vrot.slane %v2230, %v2237
    %v2240 = vunpack.c.l.s4 1966171168
    %v2241 = vunpack.c.0.s8 %v2240
    %v2242 = vlaneseq
    %v2243 = vshrl.u32 %v2242, 7
    %v2244 = vsub.s32 %v2241, %v2243
    %v2245 = vrot.slane %v2231, %v2244
    %v2246 = vcombine.low %v2238, %v2245
    %v2247 = vcombine.low %v1314, %v1318
    %v2248 = vcombine.low %v1322, %v1326
    %v2249 = vcombine.low %v1330, %v1334
    %v2250 = vcombine.low %v1338, %v1342
    %v2252 = vunpack.c.l.s4 1966171168
    %v2253 = vunpack.c.0.s8 %v2252
    %v2254 = vlaneseq
    %v2255 = vshrl.u32 %v2254, 7
    %v2256 = vsub.s32 %v2253, %v2255
    %v2257 = vrot.slane %v2247, %v2256
    %v2259 = vunpack.c.l.s4 1966171168
    %v2260 = vunpack.c.0.s8 %v2259
    %v2261 = vlaneseq
    %v2262 = vshrl.u32 %v2261, 7
    %v2263 = vsub.s32 %v2260, %v2262
    %v2264 = vrot.slane %v2248, %v2263
    %v2266 = vunpack.c.l.s4 1966171168
    %v2267 = vunpack.c.0.s8 %v2266
    %v2268 = vlaneseq
    %v2269 = vshrl.u32 %v2268, 7
    %v2270 = vsub.s32 %v2267, %v2269
    %v2271 = vrot.slane %v2249, %v2270
    %v2273 = vunpack.c.l.s4 1966171168
    %v2274 = vunpack.c.0.s8 %v2273
    %v2275 = vlaneseq
    %v2276 = vshrl.u32 %v2275, 7
    %v2277 = vsub.s32 %v2274, %v2276
    %v2278 = vrot.slane %v2250, %v2277
    %v2279 = vcombine.low %v2257, %v2264
    %v2280 = vcombine.low %v2271, %v2278
    %v2282 = vunpack.c.l.s4 1966171168
    %v2283 = vunpack.c.0.s8 %v2282
    %v2284 = vlaneseq
    %v2285 = vshrl.u32 %v2284, 7
    %v2286 = vsub.s32 %v2283, %v2285
    %v2287 = vrot.slane %v2279, %v2286
    %v2289 = vunpack.c.l.s4 1966171168
    %v2290 = vunpack.c.0.s8 %v2289
    %v2291 = vlaneseq
    %v2292 = vshrl.u32 %v2291, 7
    %v2293 = vsub.s32 %v2290, %v2292
    %v2294 = vrot.slane %v2280, %v2293
    %v2295 = vcombine.low %v2287, %v2294
    %v2296 = vcombine.low %v1346, %v1350
    %v2297 = vcombine.low %v1354, %v1358
    %v2298 = vcombine.low %v1362, %v1366
    %v2299 = vcombine.low %v1370, %v1374
    %v2301 = vunpack.c.l.s4 1966171168
    %v2302 = vunpack.c.0.s8 %v2301
    %v2303 = vlaneseq
    %v2304 = vshrl.u32 %v2303, 7
    %v2305 = vsub.s32 %v2302, %v2304
    %v2306 = vrot.slane %v2296, %v2305
    %v2308 = vunpack.c.l.s4 1966171168
    %v2309 = vunpack.c.0.s8 %v2308
    %v2310 = vlaneseq
    %v2311 = vshrl.u32 %v2310, 7
    %v2312 = vsub.s32 %v2309, %v2311
    %v2313 = vrot.slane %v2297, %v2312
    %v2315 = vunpack.c.l.s4 1966171168
    %v2316 = vunpack.c.0.s8 %v2315
    %v2317 = vlaneseq
    %v2318 = vshrl.u32 %v2317, 7
    %v2319 = vsub.s32 %v2316, %v2318
    %v2320 = vrot.slane %v2298, %v2319
    %v2322 = vunpack.c.l.s4 1966171168
    %v2323 = vunpack.c.0.s8 %v2322
    %v2324 = vlaneseq
    %v2325 = vshrl.u32 %v2324, 7
    %v2326 = vsub.s32 %v2323, %v2325
    %v2327 = vrot.slane %v2299, %v2326
    %v2328 = vcombine.low %v2306, %v2313
    %v2329 = vcombine.low %v2320, %v2327
    %v2331 = vunpack.c.l.s4 1966171168
    %v2332 = vunpack.c.0.s8 %v2331
    %v2333 = vlaneseq
    %v2334 = vshrl.u32 %v2333, 7
    %v2335 = vsub.s32 %v2332, %v2334
    %v2336 = vrot.slane %v2328, %v2335
    %v2338 = vunpack.c.l.s4 1966171168
    %v2339 = vunpack.c.0.s8 %v2338
    %v2340 = vlaneseq
    %v2341 = vshrl.u32 %v2340, 7
    %v2342 = vsub.s32 %v2339, %v2341
    %v2343 = vrot.slane %v2329, %v2342
    %v2344 = vcombine.low %v2336, %v2343
    %v2345 = vcombine.low %v1378, %v1382
    %v2346 = vcombine.low %v1386, %v1390
    %v2347 = vcombine.low %v1394, %v1398
    %v2348 = vcombine.low %v1402, %v1406
    %v2350 = vunpack.c.l.s4 1966171168
    %v2351 = vunpack.c.0.s8 %v2350
    %v2352 = vlaneseq
    %v2353 = vshrl.u32 %v2352, 7
    %v2354 = vsub.s32 %v2351, %v2353
    %v2355 = vrot.slane %v2345, %v2354
    %v2357 = vunpack.c.l.s4 1966171168
    %v2358 = vunpack.c.0.s8 %v2357
    %v2359 = vlaneseq
    %v2360 = vshrl.u32 %v2359, 7
    %v2361 = vsub.s32 %v2358, %v2360
    %v2362 = vrot.slane %v2346, %v2361
    %v2364 = vunpack.c.l.s4 1966171168
    %v2365 = vunpack.c.0.s8 %v2364
    %v2366 = vlaneseq
    %v2367 = vshrl.u32 %v2366, 7
    %v2368 = vsub.s32 %v2365, %v2367
    %v2369 = vrot.slane %v2347, %v2368
    %v2371 = vunpack.c.l.s4 1966171168
    %v2372 = vunpack.c.0.s8 %v2371
    %v2373 = vlaneseq
    %v2374 = vshrl.u32 %v2373, 7
    %v2375 = vsub.s32 %v2372, %v2374
    %v2376 = vrot.slane %v2348, %v2375
    %v2377 = vcombine.low %v2355, %v2362
    %v2378 = vcombine.low %v2369, %v2376
    %v2380 = vunpack.c.l.s4 1966171168
    %v2381 = vunpack.c.0.s8 %v2380
    %v2382 = vlaneseq
    %v2383 = vshrl.u32 %v2382, 7
    %v2384 = vsub.s32 %v2381, %v2383
    %v2385 = vrot.slane %v2377, %v2384
    %v2387 = vunpack.c.l.s4 1966171168
    %v2388 = vunpack.c.0.s8 %v2387
    %v2389 = vlaneseq
    %v2390 = vshrl.u32 %v2389, 7
    %v2391 = vsub.s32 %v2388, %v2390
    %v2392 = vrot.slane %v2378, %v2391
    %v2393 = vcombine.low %v2385, %v2392
    %v2394 = vcombine.low %v1410, %v1414
    %v2395 = vcombine.low %v1418, %v1422
    %v2396 = vcombine.low %v1426, %v1430
    %v2397 = vcombine.low %v1434, %v1438
    %v2399 = vunpack.c.l.s4 1966171168
    %v2400 = vunpack.c.0.s8 %v2399
    %v2401 = vlaneseq
    %v2402 = vshrl.u32 %v2401, 7
    %v2403 = vsub.s32 %v2400, %v2402
    %v2404 = vrot.slane %v2394, %v2403
    %v2406 = vunpack.c.l.s4 1966171168
    %v2407 = vunpack.c.0.s8 %v2406
    %v2408 = vlaneseq
    %v2409 = vshrl.u32 %v2408, 7
    %v2410 = vsub.s32 %v2407, %v2409
    %v2411 = vrot.slane %v2395, %v2410
    %v2413 = vunpack.c.l.s4 1966171168
    %v2414 = vunpack.c.0.s8 %v2413
    %v2415 = vlaneseq
    %v2416 = vshrl.u32 %v2415, 7
    %v2417 = vsub.s32 %v2414, %v2416
    %v2418 = vrot.slane %v2396, %v2417
    %v2420 = vunpack.c.l.s4 1966171168
    %v2421 = vunpack.c.0.s8 %v2420
    %v2422 = vlaneseq
    %v2423 = vshrl.u32 %v2422, 7
    %v2424 = vsub.s32 %v2421, %v2423
    %v2425 = vrot.slane %v2397, %v2424
    %v2426 = vcombine.low %v2404, %v2411
    %v2427 = vcombine.low %v2418, %v2425
    %v2429 = vunpack.c.l.s4 1966171168
    %v2430 = vunpack.c.0.s8 %v2429
    %v2431 = vlaneseq
    %v2432 = vshrl.u32 %v2431, 7
    %v2433 = vsub.s32 %v2430, %v2432
    %v2434 = vrot.slane %v2426, %v2433
    %v2436 = vunpack.c.l.s4 1966171168
    %v2437 = vunpack.c.0.s8 %v2436
    %v2438 = vlaneseq
    %v2439 = vshrl.u32 %v2438, 7
    %v2440 = vsub.s32 %v2437, %v2439
    %v2441 = vrot.slane %v2427, %v2440
    %v2442 = vcombine.low %v2434, %v2441
    %v2443 = vcombine.low %v1442, %v1446
    %v2444 = vcombine.low %v1450, %v1454
    %v2445 = vcombine.low %v1458, %v1462
    %v2446 = vcombine.low %v1466, %v1470
    %v2448 = vunpack.c.l.s4 1966171168
    %v2449 = vunpack.c.0.s8 %v2448
    %v2450 = vlaneseq
    %v2451 = vshrl.u32 %v2450, 7
    %v2452 = vsub.s32 %v2449, %v2451
    %v2453 = vrot.slane %v2443, %v2452
    %v2455 = vunpack.c.l.s4 1966171168
    %v2456 = vunpack.c.0.s8 %v2455
    %v2457 = vlaneseq
    %v2458 = vshrl.u32 %v2457, 7
    %v2459 = vsub.s32 %v2456, %v2458
    %v2460 = vrot.slane %v2444, %v2459
    %v2462 = vunpack.c.l.s4 1966171168
    %v2463 = vunpack.c.0.s8 %v2462
    %v2464 = vlaneseq
    %v2465 = vshrl.u32 %v2464, 7
    %v2466 = vsub.s32 %v2463, %v2465
    %v2467 = vrot.slane %v2445, %v2466
    %v2469 = vunpack.c.l.s4 1966171168
    %v2470 = vunpack.c.0.s8 %v2469
    %v2471 = vlaneseq
    %v2472 = vshrl.u32 %v2471, 7
    %v2473 = vsub.s32 %v2470, %v2472
    %v2474 = vrot.slane %v2446, %v2473
    %v2475 = vcombine.low %v2453, %v2460
    %v2476 = vcombine.low %v2467, %v2474
    %v2478 = vunpack.c.l.s4 1966171168
    %v2479 = vunpack.c.0.s8 %v2478
    %v2480 = vlaneseq
    %v2481 = vshrl.u32 %v2480, 7
    %v2482 = vsub.s32 %v2479, %v2481
    %v2483 = vrot.slane %v2475, %v2482
    %v2485 = vunpack.c.l.s4 1966171168
    %v2486 = vunpack.c.0.s8 %v2485
    %v2487 = vlaneseq
    %v2488 = vshrl.u32 %v2487, 7
    %v2489 = vsub.s32 %v2486, %v2488
    %v2490 = vrot.slane %v2476, %v2489
    %v2491 = vcombine.low %v2483, %v2490
    %v2492 = vcombine.low %v1474, %v1478
    %v2493 = vcombine.low %v1482, %v1486
    %v2494 = vcombine.low %v1490, %v1494
    %v2495 = vcombine.low %v1498, %v1502
    %v2497 = vunpack.c.l.s4 1966171168
    %v2498 = vunpack.c.0.s8 %v2497
    %v2499 = vlaneseq
    %v2500 = vshrl.u32 %v2499, 7
    %v2501 = vsub.s32 %v2498, %v2500
    %v2502 = vrot.slane %v2492, %v2501
    %v2504 = vunpack.c.l.s4 1966171168
    %v2505 = vunpack.c.0.s8 %v2504
    %v2506 = vlaneseq
    %v2507 = vshrl.u32 %v2506, 7
    %v2508 = vsub.s32 %v2505, %v2507
    %v2509 = vrot.slane %v2493, %v2508
    %v2511 = vunpack.c.l.s4 1966171168
    %v2512 = vunpack.c.0.s8 %v2511
    %v2513 = vlaneseq
    %v2514 = vshrl.u32 %v2513, 7
    %v2515 = vsub.s32 %v2512, %v2514
    %v2516 = vrot.slane %v2494, %v2515
    %v2518 = vunpack.c.l.s4 1966171168
    %v2519 = vunpack.c.0.s8 %v2518
    %v2520 = vlaneseq
    %v2521 = vshrl.u32 %v2520, 7
    %v2522 = vsub.s32 %v2519, %v2521
    %v2523 = vrot.slane %v2495, %v2522
    %v2524 = vcombine.low %v2502, %v2509
    %v2525 = vcombine.low %v2516, %v2523
    %v2527 = vunpack.c.l.s4 1966171168
    %v2528 = vunpack.c.0.s8 %v2527
    %v2529 = vlaneseq
    %v2530 = vshrl.u32 %v2529, 7
    %v2531 = vsub.s32 %v2528, %v2530
    %v2532 = vrot.slane %v2524, %v2531
    %v2534 = vunpack.c.l.s4 1966171168
    %v2535 = vunpack.c.0.s8 %v2534
    %v2536 = vlaneseq
    %v2537 = vshrl.u32 %v2536, 7
    %v2538 = vsub.s32 %v2535, %v2537
    %v2539 = vrot.slane %v2525, %v2538
    %v2540 = vcombine.low %v2532, %v2539
    %v2541 = vcombine.low %v1506, %v1510
    %v2542 = vcombine.low %v1514, %v1518
    %v2543 = vcombine.low %v1522, %v1526
    %v2544 = vcombine.low %v1530, %v1534
    %v2546 = vunpack.c.l.s4 1966171168
    %v2547 = vunpack.c.0.s8 %v2546
    %v2548 = vlaneseq
    %v2549 = vshrl.u32 %v2548, 7
    %v2550 = vsub.s32 %v2547, %v2549
    %v2551 = vrot.slane %v2541, %v2550
    %v2553 = vunpack.c.l.s4 1966171168
    %v2554 = vunpack.c.0.s8 %v2553
    %v2555 = vlaneseq
    %v2556 = vshrl.u32 %v2555, 7
    %v2557 = vsub.s32 %v2554, %v2556
    %v2558 = vrot.slane %v2542, %v2557
    %v2560 = vunpack.c.l.s4 1966171168
    %v2561 = vunpack.c.0.s8 %v2560
    %v2562 = vlaneseq
    %v2563 = vshrl.u32 %v2562, 7
    %v2564 = vsub.s32 %v2561, %v2563
    %v2565 = vrot.slane %v2543, %v2564
    %v2567 = vunpack.c.l.s4 1966171168
    %v2568 = vunpack.c.0.s8 %v2567
    %v2569 = vlaneseq
    %v2570 = vshrl.u32 %v2569, 7
    %v2571 = vsub.s32 %v2568, %v2570
    %v2572 = vrot.slane %v2544, %v2571
    %v2573 = vcombine.low %v2551, %v2558
    %v2574 = vcombine.low %v2565, %v2572
    %v2576 = vunpack.c.l.s4 1966171168
    %v2577 = vunpack.c.0.s8 %v2576
    %v2578 = vlaneseq
    %v2579 = vshrl.u32 %v2578, 7
    %v2580 = vsub.s32 %v2577, %v2579
    %v2581 = vrot.slane %v2573, %v2580
    %v2583 = vunpack.c.l.s4 1966171168
    %v2584 = vunpack.c.0.s8 %v2583
    %v2585 = vlaneseq
    %v2586 = vshrl.u32 %v2585, 7
    %v2587 = vsub.s32 %v2584, %v2586
    %v2588 = vrot.slane %v2574, %v2587
    %v2589 = vcombine.low %v2581, %v2588
    %v2590 = vcombine.low %v1538, %v1542
    %v2591 = vcombine.low %v1546, %v1550
    %v2592 = vcombine.low %v1554, %v1558
    %v2593 = vcombine.low %v1562, %v1566
    %v2595 = vunpack.c.l.s4 1966171168
    %v2596 = vunpack.c.0.s8 %v2595
    %v2597 = vlaneseq
    %v2598 = vshrl.u32 %v2597, 7
    %v2599 = vsub.s32 %v2596, %v2598
    %v2600 = vrot.slane %v2590, %v2599
    %v2602 = vunpack.c.l.s4 1966171168
    %v2603 = vunpack.c.0.s8 %v2602
    %v2604 = vlaneseq
    %v2605 = vshrl.u32 %v2604, 7
    %v2606 = vsub.s32 %v2603, %v2605
    %v2607 = vrot.slane %v2591, %v2606
    %v2609 = vunpack.c.l.s4 1966171168
    %v2610 = vunpack.c.0.s8 %v2609
    %v2611 = vlaneseq
    %v2612 = vshrl.u32 %v2611, 7
    %v2613 = vsub.s32 %v2610, %v2612
    %v2614 = vrot.slane %v2592, %v2613
    %v2616 = vunpack.c.l.s4 1966171168
    %v2617 = vunpack.c.0.s8 %v2616
    %v2618 = vlaneseq
    %v2619 = vshrl.u32 %v2618, 7
    %v2620 = vsub.s32 %v2617, %v2619
    %v2621 = vrot.slane %v2593, %v2620
    %v2622 = vcombine.low %v2600, %v2607
    %v2623 = vcombine.low %v2614, %v2621
    %v2625 = vunpack.c.l.s4 1966171168
    %v2626 = vunpack.c.0.s8 %v2625
    %v2627 = vlaneseq
    %v2628 = vshrl.u32 %v2627, 7
    %v2629 = vsub.s32 %v2626, %v2628
    %v2630 = vrot.slane %v2622, %v2629
    %v2632 = vunpack.c.l.s4 1966171168
    %v2633 = vunpack.c.0.s8 %v2632
    %v2634 = vlaneseq
    %v2635 = vshrl.u32 %v2634, 7
    %v2636 = vsub.s32 %v2633, %v2635
    %v2637 = vrot.slane %v2623, %v2636
    %v2638 = vcombine.low %v2630, %v2637
    %v2639 = vcombine.low %v1570, %v1574
    %v2640 = vcombine.low %v1578, %v1582
    %v2641 = vcombine.low %v1586, %v1590
    %v2642 = vcombine.low %v1594, %v1598
    %v2644 = vunpack.c.l.s4 1966171168
    %v2645 = vunpack.c.0.s8 %v2644
    %v2646 = vlaneseq
    %v2647 = vshrl.u32 %v2646, 7
    %v2648 = vsub.s32 %v2645, %v2647
    %v2649 = vrot.slane %v2639, %v2648
    %v2651 = vunpack.c.l.s4 1966171168
    %v2652 = vunpack.c.0.s8 %v2651
    %v2653 = vlaneseq
    %v2654 = vshrl.u32 %v2653, 7
    %v2655 = vsub.s32 %v2652, %v2654
    %v2656 = vrot.slane %v2640, %v2655
    %v2658 = vunpack.c.l.s4 1966171168
    %v2659 = vunpack.c.0.s8 %v2658
    %v2660 = vlaneseq
    %v2661 = vshrl.u32 %v2660, 7
    %v2662 = vsub.s32 %v2659, %v2661
    %v2663 = vrot.slane %v2641, %v2662
    %v2665 = vunpack.c.l.s4 1966171168
    %v2666 = vunpack.c.0.s8 %v2665
    %v2667 = vlaneseq
    %v2668 = vshrl.u32 %v2667, 7
    %v2669 = vsub.s32 %v2666, %v2668
    %v2670 = vrot.slane %v2642, %v2669
    %v2671 = vcombine.low %v2649, %v2656
    %v2672 = vcombine.low %v2663, %v2670
    %v2674 = vunpack.c.l.s4 1966171168
    %v2675 = vunpack.c.0.s8 %v2674
    %v2676 = vlaneseq
    %v2677 = vshrl.u32 %v2676, 7
    %v2678 = vsub.s32 %v2675, %v2677
    %v2679 = vrot.slane %v2671, %v2678
    %v2681 = vunpack.c.l.s4 1966171168
    %v2682 = vunpack.c.0.s8 %v2681
    %v2683 = vlaneseq
    %v2684 = vshrl.u32 %v2683, 7
    %v2685 = vsub.s32 %v2682, %v2684
    %v2686 = vrot.slane %v2672, %v2685
    %v2687 = vcombine.low %v2679, %v2686
    %v2688 = vcombine.low %v1602, %v1606
    %v2689 = vcombine.low %v1610, %v1614
    %v2690 = vcombine.low %v1618, %v1622
    %v2691 = vcombine.low %v1626, %v1630
    %v2693 = vunpack.c.l.s4 1966171168
    %v2694 = vunpack.c.0.s8 %v2693
    %v2695 = vlaneseq
    %v2696 = vshrl.u32 %v2695, 7
    %v2697 = vsub.s32 %v2694, %v2696
    %v2698 = vrot.slane %v2688, %v2697
    %v2700 = vunpack.c.l.s4 1966171168
    %v2701 = vunpack.c.0.s8 %v2700
    %v2702 = vlaneseq
    %v2703 = vshrl.u32 %v2702, 7
    %v2704 = vsub.s32 %v2701, %v2703
    %v2705 = vrot.slane %v2689, %v2704
    %v2707 = vunpack.c.l.s4 1966171168
    %v2708 = vunpack.c.0.s8 %v2707
    %v2709 = vlaneseq
    %v2710 = vshrl.u32 %v2709, 7
    %v2711 = vsub.s32 %v2708, %v2710
    %v2712 = vrot.slane %v2690, %v2711
    %v2714 = vunpack.c.l.s4 1966171168
    %v2715 = vunpack.c.0.s8 %v2714
    %v2716 = vlaneseq
    %v2717 = vshrl.u32 %v2716, 7
    %v2718 = vsub.s32 %v2715, %v2717
    %v2719 = vrot.slane %v2691, %v2718
    %v2720 = vcombine.low %v2698, %v2705
    %v2721 = vcombine.low %v2712, %v2719
    %v2723 = vunpack.c.l.s4 1966171168
    %v2724 = vunpack.c.0.s8 %v2723
    %v2725 = vlaneseq
    %v2726 = vshrl.u32 %v2725, 7
    %v2727 = vsub.s32 %v2724, %v2726
    %v2728 = vrot.slane %v2720, %v2727
    %v2730 = vunpack.c.l.s4 1966171168
    %v2731 = vunpack.c.0.s8 %v2730
    %v2732 = vlaneseq
    %v2733 = vshrl.u32 %v2732, 7
    %v2734 = vsub.s32 %v2731, %v2733
    %v2735 = vrot.slane %v2721, %v2734
    %v2736 = vcombine.low %v2728, %v2735
    %v2737 = vcombine.low %v1634, %v1638
    %v2738 = vcombine.low %v1642, %v1646
    %v2739 = vcombine.low %v1650, %v1654
    %v2740 = vcombine.low %v1658, %v1662
    %v2742 = vunpack.c.l.s4 1966171168
    %v2743 = vunpack.c.0.s8 %v2742
    %v2744 = vlaneseq
    %v2745 = vshrl.u32 %v2744, 7
    %v2746 = vsub.s32 %v2743, %v2745
    %v2747 = vrot.slane %v2737, %v2746
    %v2749 = vunpack.c.l.s4 1966171168
    %v2750 = vunpack.c.0.s8 %v2749
    %v2751 = vlaneseq
    %v2752 = vshrl.u32 %v2751, 7
    %v2753 = vsub.s32 %v2750, %v2752
    %v2754 = vrot.slane %v2738, %v2753
    %v2756 = vunpack.c.l.s4 1966171168
    %v2757 = vunpack.c.0.s8 %v2756
    %v2758 = vlaneseq
    %v2759 = vshrl.u32 %v2758, 7
    %v2760 = vsub.s32 %v2757, %v2759
    %v2761 = vrot.slane %v2739, %v2760
    %v2763 = vunpack.c.l.s4 1966171168
    %v2764 = vunpack.c.0.s8 %v2763
    %v2765 = vlaneseq
    %v2766 = vshrl.u32 %v2765, 7
    %v2767 = vsub.s32 %v2764, %v2766
    %v2768 = vrot.slane %v2740, %v2767
    %v2769 = vcombine.low %v2747, %v2754
    %v2770 = vcombine.low %v2761, %v2768
    %v2772 = vunpack.c.l.s4 1966171168
    %v2773 = vunpack.c.0.s8 %v2772
    %v2774 = vlaneseq
    %v2775 = vshrl.u32 %v2774, 7
    %v2776 = vsub.s32 %v2773, %v2775
    %v2777 = vrot.slane %v2769, %v2776
    %v2779 = vunpack.c.l.s4 1966171168
    %v2780 = vunpack.c.0.s8 %v2779
    %v2781 = vlaneseq
    %v2782 = vshrl.u32 %v2781, 7
    %v2783 = vsub.s32 %v2780, %v2782
    %v2784 = vrot.slane %v2770, %v2783
    %v2785 = vcombine.low %v2777, %v2784
    %v2786 = vcombine.low %v1666, %v1670
    %v2787 = vcombine.low %v1674, %v1678
    %v2788 = vcombine.low %v1682, %v1686
    %v2789 = vcombine.low %v1690, %v1694
    %v2791 = vunpack.c.l.s4 1966171168
    %v2792 = vunpack.c.0.s8 %v2791
    %v2793 = vlaneseq
    %v2794 = vshrl.u32 %v2793, 7
    %v2795 = vsub.s32 %v2792, %v2794
    %v2796 = vrot.slane %v2786, %v2795
    %v2798 = vunpack.c.l.s4 1966171168
    %v2799 = vunpack.c.0.s8 %v2798
    %v2800 = vlaneseq
    %v2801 = vshrl.u32 %v2800, 7
    %v2802 = vsub.s32 %v2799, %v2801
    %v2803 = vrot.slane %v2787, %v2802
    %v2805 = vunpack.c.l.s4 1966171168
    %v2806 = vunpack.c.0.s8 %v2805
    %v2807 = vlaneseq
    %v2808 = vshrl.u32 %v2807, 7
    %v2809 = vsub.s32 %v2806, %v2808
    %v2810 = vrot.slane %v2788, %v2809
    %v2812 = vunpack.c.l.s4 1966171168
    %v2813 = vunpack.c.0.s8 %v2812
    %v2814 = vlaneseq
    %v2815 = vshrl.u32 %v2814, 7
    %v2816 = vsub.s32 %v2813, %v2815
    %v2817 = vrot.slane %v2789, %v2816
    %v2818 = vcombine.low %v2796, %v2803
    %v2819 = vcombine.low %v2810, %v2817
    %v2821 = vunpack.c.l.s4 1966171168
    %v2822 = vunpack.c.0.s8 %v2821
    %v2823 = vlaneseq
    %v2824 = vshrl.u32 %v2823, 7
    %v2825 = vsub.s32 %v2822, %v2824
    %v2826 = vrot.slane %v2818, %v2825
    %v2828 = vunpack.c.l.s4 1966171168
    %v2829 = vunpack.c.0.s8 %v2828
    %v2830 = vlaneseq
    %v2831 = vshrl.u32 %v2830, 7
    %v2832 = vsub.s32 %v2829, %v2831
    %v2833 = vrot.slane %v2819, %v2832
    %v2834 = vcombine.low %v2826, %v2833
    %v2835 = vcombine.low %v1698, %v1702
    %v2836 = vcombine.low %v1706, %v1710
    %v2837 = vcombine.low %v1714, %v1718
    %v2838 = vcombine.low %v1722, %v1726
    %v2840 = vunpack.c.l.s4 1966171168
    %v2841 = vunpack.c.0.s8 %v2840
    %v2842 = vlaneseq
    %v2843 = vshrl.u32 %v2842, 7
    %v2844 = vsub.s32 %v2841, %v2843
    %v2845 = vrot.slane %v2835, %v2844
    %v2847 = vunpack.c.l.s4 1966171168
    %v2848 = vunpack.c.0.s8 %v2847
    %v2849 = vlaneseq
    %v2850 = vshrl.u32 %v2849, 7
    %v2851 = vsub.s32 %v2848, %v2850
    %v2852 = vrot.slane %v2836, %v2851
    %v2854 = vunpack.c.l.s4 1966171168
    %v2855 = vunpack.c.0.s8 %v2854
    %v2856 = vlaneseq
    %v2857 = vshrl.u32 %v2856, 7
    %v2858 = vsub.s32 %v2855, %v2857
    %v2859 = vrot.slane %v2837, %v2858
    %v2861 = vunpack.c.l.s4 1966171168
    %v2862 = vunpack.c.0.s8 %v2861
    %v2863 = vlaneseq
    %v2864 = vshrl.u32 %v2863, 7
    %v2865 = vsub.s32 %v2862, %v2864
    %v2866 = vrot.slane %v2838, %v2865
    %v2867 = vcombine.low %v2845, %v2852
    %v2868 = vcombine.low %v2859, %v2866
    %v2870 = vunpack.c.l.s4 1966171168
    %v2871 = vunpack.c.0.s8 %v2870
    %v2872 = vlaneseq
    %v2873 = vshrl.u32 %v2872, 7
    %v2874 = vsub.s32 %v2871, %v2873
    %v2875 = vrot.slane %v2867, %v2874
    %v2877 = vunpack.c.l.s4 1966171168
    %v2878 = vunpack.c.0.s8 %v2877
    %v2879 = vlaneseq
    %v2880 = vshrl.u32 %v2879, 7
    %v2881 = vsub.s32 %v2878, %v2880
    %v2882 = vrot.slane %v2868, %v2881
    %v2883 = vcombine.low %v2875, %v2882
    %v2884 = vcombine.low %v1730, %v1734
    %v2885 = vcombine.low %v1738, %v1742
    %v2886 = vcombine.low %v1746, %v1750
    %v2887 = vcombine.low %v1754, %v1758
    %v2889 = vunpack.c.l.s4 1966171168
    %v2890 = vunpack.c.0.s8 %v2889
    %v2891 = vlaneseq
    %v2892 = vshrl.u32 %v2891, 7
    %v2893 = vsub.s32 %v2890, %v2892
    %v2894 = vrot.slane %v2884, %v2893
    %v2896 = vunpack.c.l.s4 1966171168
    %v2897 = vunpack.c.0.s8 %v2896
    %v2898 = vlaneseq
    %v2899 = vshrl.u32 %v2898, 7
    %v2900 = vsub.s32 %v2897, %v2899
    %v2901 = vrot.slane %v2885, %v2900
    %v2903 = vunpack.c.l.s4 1966171168
    %v2904 = vunpack.c.0.s8 %v2903
    %v2905 = vlaneseq
    %v2906 = vshrl.u32 %v2905, 7
    %v2907 = vsub.s32 %v2904, %v2906
    %v2908 = vrot.slane %v2886, %v2907
    %v2910 = vunpack.c.l.s4 1966171168
    %v2911 = vunpack.c.0.s8 %v2910
    %v2912 = vlaneseq
    %v2913 = vshrl.u32 %v2912, 7
    %v2914 = vsub.s32 %v2911, %v2913
    %v2915 = vrot.slane %v2887, %v2914
    %v2916 = vcombine.low %v2894, %v2901
    %v2917 = vcombine.low %v2908, %v2915
    %v2919 = vunpack.c.l.s4 1966171168
    %v2920 = vunpack.c.0.s8 %v2919
    %v2921 = vlaneseq
    %v2922 = vshrl.u32 %v2921, 7
    %v2923 = vsub.s32 %v2920, %v2922
    %v2924 = vrot.slane %v2916, %v2923
    %v2926 = vunpack.c.l.s4 1966171168
    %v2927 = vunpack.c.0.s8 %v2926
    %v2928 = vlaneseq
    %v2929 = vshrl.u32 %v2928, 7
    %v2930 = vsub.s32 %v2927, %v2929
    %v2931 = vrot.slane %v2917, %v2930
    %v2932 = vcombine.low %v2924, %v2931
    %v2933 = vcombine.low %v1762, %v1766
    %v2934 = vcombine.low %v1770, %v1774
    %v2935 = vcombine.low %v1778, %v1782
    %v2936 = vcombine.low %v1786, %v1790
    %v2938 = vunpack.c.l.s4 1966171168
    %v2939 = vunpack.c.0.s8 %v2938
    %v2940 = vlaneseq
    %v2941 = vshrl.u32 %v2940, 7
    %v2942 = vsub.s32 %v2939, %v2941
    %v2943 = vrot.slane %v2933, %v2942
    %v2945 = vunpack.c.l.s4 1966171168
    %v2946 = vunpack.c.0.s8 %v2945
    %v2947 = vlaneseq
    %v2948 = vshrl.u32 %v2947, 7
    %v2949 = vsub.s32 %v2946, %v2948
    %v2950 = vrot.slane %v2934, %v2949
    %v2952 = vunpack.c.l.s4 1966171168
    %v2953 = vunpack.c.0.s8 %v2952
    %v2954 = vlaneseq
    %v2955 = vshrl.u32 %v2954, 7
    %v2956 = vsub.s32 %v2953, %v2955
    %v2957 = vrot.slane %v2935, %v2956
    %v2959 = vunpack.c.l.s4 1966171168
    %v2960 = vunpack.c.0.s8 %v2959
    %v2961 = vlaneseq
    %v2962 = vshrl.u32 %v2961, 7
    %v2963 = vsub.s32 %v2960, %v2962
    %v2964 = vrot.slane %v2936, %v2963
    %v2965 = vcombine.low %v2943, %v2950
    %v2966 = vcombine.low %v2957, %v2964
    %v2968 = vunpack.c.l.s4 1966171168
    %v2969 = vunpack.c.0.s8 %v2968
    %v2970 = vlaneseq
    %v2971 = vshrl.u32 %v2970, 7
    %v2972 = vsub.s32 %v2969, %v2971
    %v2973 = vrot.slane %v2965, %v2972
    %v2975 = vunpack.c.l.s4 1966171168
    %v2976 = vunpack.c.0.s8 %v2975
    %v2977 = vlaneseq
    %v2978 = vshrl.u32 %v2977, 7
    %v2979 = vsub.s32 %v2976, %v2978
    %v2980 = vrot.slane %v2966, %v2979
    %v2981 = vcombine.low %v2973, %v2980
    %v2982 = vcombine.low %v1794, %v1798
    %v2983 = vcombine.low %v1802, %v1806
    %v2984 = vcombine.low %v1810, %v1814
    %v2985 = vcombine.low %v1818, %v1822
    %v2987 = vunpack.c.l.s4 1966171168
    %v2988 = vunpack.c.0.s8 %v2987
    %v2989 = vlaneseq
    %v2990 = vshrl.u32 %v2989, 7
    %v2991 = vsub.s32 %v2988, %v2990
    %v2992 = vrot.slane %v2982, %v2991
    %v2994 = vunpack.c.l.s4 1966171168
    %v2995 = vunpack.c.0.s8 %v2994
    %v2996 = vlaneseq
    %v2997 = vshrl.u32 %v2996, 7
    %v2998 = vsub.s32 %v2995, %v2997
    %v2999 = vrot.slane %v2983, %v2998
    %v3001 = vunpack.c.l.s4 1966171168
    %v3002 = vunpack.c.0.s8 %v3001
    %v3003 = vlaneseq
    %v3004 = vshrl.u32 %v3003, 7
    %v3005 = vsub.s32 %v3002, %v3004
    %v3006 = vrot.slane %v2984, %v3005
    %v3008 = vunpack.c.l.s4 1966171168
    %v3009 = vunpack.c.0.s8 %v3008
    %v3010 = vlaneseq
    %v3011 = vshrl.u32 %v3010, 7
    %v3012 = vsub.s32 %v3009, %v3011
    %v3013 = vrot.slane %v2985, %v3012
    %v3014 = vcombine.low %v2992, %v2999
    %v3015 = vcombine.low %v3006, %v3013
    %v3017 = vunpack.c.l.s4 1966171168
    %v3018 = vunpack.c.0.s8 %v3017
    %v3019 = vlaneseq
    %v3020 = vshrl.u32 %v3019, 7
    %v3021 = vsub.s32 %v3018, %v3020
    %v3022 = vrot.slane %v3014, %v3021
    %v3024 = vunpack.c.l.s4 1966171168
    %v3025 = vunpack.c.0.s8 %v3024
    %v3026 = vlaneseq
    %v3027 = vshrl.u32 %v3026, 7
    %v3028 = vsub.s32 %v3025, %v3027
    %v3029 = vrot.slane %v3015, %v3028
    %v3030 = vcombine.low %v3022, %v3029
    %v3031 = vcombine.low %v1826, %v1830
    %v3032 = vcombine.low %v1834, %v1838
    %v3033 = vcombine.low %v1842, %v1846
    %v3034 = vcombine.low %v1850, %v1854
    %v3036 = vunpack.c.l.s4 1966171168
    %v3037 = vunpack.c.0.s8 %v3036
    %v3038 = vlaneseq
    %v3039 = vshrl.u32 %v3038, 7
    %v3040 = vsub.s32 %v3037, %v3039
    %v3041 = vrot.slane %v3031, %v3040
    %v3043 = vunpack.c.l.s4 1966171168
    %v3044 = vunpack.c.0.s8 %v3043
    %v3045 = vlaneseq
    %v3046 = vshrl.u32 %v3045, 7
    %v3047 = vsub.s32 %v3044, %v3046
    %v3048 = vrot.slane %v3032, %v3047
    %v3050 = vunpack.c.l.s4 1966171168
    %v3051 = vunpack.c.0.s8 %v3050
    %v3052 = vlaneseq
    %v3053 = vshrl.u32 %v3052, 7
    %v3054 = vsub.s32 %v3051, %v3053
    %v3055 = vrot.slane %v3033, %v3054
    %v3057 = vunpack.c.l.s4 1966171168
    %v3058 = vunpack.c.0.s8 %v3057
    %v3059 = vlaneseq
    %v3060 = vshrl.u32 %v3059, 7
    %v3061 = vsub.s32 %v3058, %v3060
    %v3062 = vrot.slane %v3034, %v3061
    %v3063 = vcombine.low %v3041, %v3048
    %v3064 = vcombine.low %v3055, %v3062
    %v3066 = vunpack.c.l.s4 1966171168
    %v3067 = vunpack.c.0.s8 %v3066
    %v3068 = vlaneseq
    %v3069 = vshrl.u32 %v3068, 7
    %v3070 = vsub.s32 %v3067, %v3069
    %v3071 = vrot.slane %v3063, %v3070
    %v3073 = vunpack.c.l.s4 1966171168
    %v3074 = vunpack.c.0.s8 %v3073
    %v3075 = vlaneseq
    %v3076 = vshrl.u32 %v3075, 7
    %v3077 = vsub.s32 %v3074, %v3076
    %v3078 = vrot.slane %v3064, %v3077
    %v3079 = vcombine.low %v3071, %v3078
    %3080 = vset.pattern.permute.xlu0 0
    %3081 = vperm.xlu0 %3080, %v1903
    %v3082 = vpop.permute.xlu0 %3081
    %3083 = vset.pattern.permute.xlu0 0
    %3084 = vperm.xlu0 %3083, %v1952
    %v3085 = vpop.permute.xlu0 %3084
    %3086 = vset.pattern.permute.xlu0 0
    %3087 = vperm.xlu0 %3086, %v2001
    %v3088 = vpop.permute.xlu0 %3087
    %3089 = vset.pattern.permute.xlu0 0
    %3090 = vperm.xlu0 %3089, %v2050
    %v3091 = vpop.permute.xlu0 %3090
    %3092 = vset.pattern.permute.xlu0 0
    %3093 = vperm.xlu0 %3092, %v2099
    %v3094 = vpop.permute.xlu0 %3093
    %3095 = vset.pattern.permute.xlu0 0
    %3096 = vperm.xlu0 %3095, %v2148
    %v3097 = vpop.permute.xlu0 %3096
    %3098 = vset.pattern.permute.xlu0 0
    %3099 = vperm.xlu0 %3098, %v2197
    %v3100 = vpop.permute.xlu0 %3099
    %3101 = vset.pattern.permute.xlu0 0
    %3102 = vperm.xlu0 %3101, %v2246
    %v3103 = vpop.permute.xlu0 %3102
    %3104 = vset.pattern.permute.xlu0 0
    %3105 = vperm.xlu0 %3104, %v2295
    %v3106 = vpop.permute.xlu0 %3105
    %3107 = vset.pattern.permute.xlu0 0
    %3108 = vperm.xlu0 %3107, %v2344
    %v3109 = vpop.permute.xlu0 %3108
    %3110 = vset.pattern.permute.xlu0 0
    %3111 = vperm.xlu0 %3110, %v2393
    %v3112 = vpop.permute.xlu0 %3111
    %3113 = vset.pattern.permute.xlu0 0
    %3114 = vperm.xlu0 %3113, %v2442
    %v3115 = vpop.permute.xlu0 %3114
    %3116 = vset.pattern.permute.xlu0 0
    %3117 = vperm.xlu0 %3116, %v2491
    %v3118 = vpop.permute.xlu0 %3117
    %3119 = vset.pattern.permute.xlu0 0
    %3120 = vperm.xlu0 %3119, %v2540
    %v3121 = vpop.permute.xlu0 %3120
    %3122 = vset.pattern.permute.xlu0 0
    %3123 = vperm.xlu0 %3122, %v2589
    %v3124 = vpop.permute.xlu0 %3123
    %3125 = vset.pattern.permute.xlu0 0
    %3126 = vperm.xlu0 %3125, %v2638
    %v3127 = vpop.permute.xlu0 %3126
    %3128 = vset.pattern.permute.xlu0 0
    %3129 = vperm.xlu0 %3128, %v2687
    %v3130 = vpop.permute.xlu0 %3129
    %3131 = vset.pattern.permute.xlu0 0
    %3132 = vperm.xlu0 %3131, %v2736
    %v3133 = vpop.permute.xlu0 %3132
    %3134 = vset.pattern.permute.xlu0 0
    %3135 = vperm.xlu0 %3134, %v2785
    %v3136 = vpop.permute.xlu0 %3135
    %3137 = vset.pattern.permute.xlu0 0
    %3138 = vperm.xlu0 %3137, %v2834
    %v3139 = vpop.permute.xlu0 %3138
    %3140 = vset.pattern.permute.xlu0 0
    %3141 = vperm.xlu0 %3140, %v2883
    %v3142 = vpop.permute.xlu0 %3141
    %3143 = vset.pattern.permute.xlu0 0
    %3144 = vperm.xlu0 %3143, %v2932
    %v3145 = vpop.permute.xlu0 %3144
    %3146 = vset.pattern.permute.xlu0 0
    %3147 = vperm.xlu0 %3146, %v2981
    %v3148 = vpop.permute.xlu0 %3147
    %3149 = vset.pattern.permute.xlu0 0
    %3150 = vperm.xlu0 %3149, %v3030
    %v3151 = vpop.permute.xlu0 %3150
    %3152 = vset.pattern.permute.xlu0 0
    %3153 = vperm.xlu0 %3152, %v3079
    %v3154 = vpop.permute.xlu0 %3153
    %v3155 = vlaneseq
    %v3156 = vand.u32 %v3155, 127
    %v3157 = vlaneseq
    %v3158 = vshrl.u32 %v3157, 7
    %v3159 = vsub.s32 %v3156, %v3158
    %v3160 = vrot.slane %v3082, %v3159
    %v3161 = vadd.s32 %v3156, 4294967288
    %v3162 = vlaneseq
    %v3163 = vshrl.u32 %v3162, 7
    %v3164 = vsub.s32 %v3161, %v3163
    %v3165 = vrot.slane %v3085, %v3164
    %vm3166 = vcmask 130112
    %v3167 = vsel %vm3166, %v3165, %v3160
    %v3168 = vadd.s32 %v3156, 4294967280
    %v3169 = vlaneseq
    %v3170 = vshrl.u32 %v3169, 7
    %v3171 = vsub.s32 %v3168, %v3170
    %v3172 = vrot.slane %v3088, %v3171
    %vm3173 = vcmask 195712
    %v3174 = vsel %vm3173, %v3172, %v3167
    %v3175 = vadd.s32 %v3156, 4294967272
    %v3176 = vlaneseq
    %v3177 = vshrl.u32 %v3176, 7
    %v3178 = vsub.s32 %v3175, %v3177
    %v3179 = vrot.slane %v3091, %v3178
    %vm3180 = vcmask 261312
    %v3181 = vsel %vm3180, %v3179, %v3174
    %v3182 = vadd.s32 %v3156, 4294967264
    %v3183 = vlaneseq
    %v3184 = vshrl.u32 %v3183, 7
    %v3185 = vsub.s32 %v3182, %v3184
    %v3186 = vrot.slane %v3094, %v3185
    %vm3187 = vcmask 326912
    %v3188 = vsel %vm3187, %v3186, %v3181
    %v3189 = vadd.s32 %v3156, 4294967256
    %v3190 = vlaneseq
    %v3191 = vshrl.u32 %v3190, 7
    %v3192 = vsub.s32 %v3189, %v3191
    %v3193 = vrot.slane %v3097, %v3192
    %vm3194 = vcmask 392512
    %v3195 = vsel %vm3194, %v3193, %v3188
    %v3196 = vadd.s32 %v3156, 4294967248
    %v3197 = vlaneseq
    %v3198 = vshrl.u32 %v3197, 7
    %v3199 = vsub.s32 %v3196, %v3198
    %v3200 = vrot.slane %v3100, %v3199
    %vm3201 = vcmask 458112
    %v3202 = vsel %vm3201, %v3200, %v3195
    %v3203 = vadd.s32 %v3156, 4294967240
    %v3204 = vlaneseq
    %v3205 = vshrl.u32 %v3204, 7
    %v3206 = vsub.s32 %v3203, %v3205
    %v3207 = vrot.slane %v3103, %v3206
    %vm3208 = vcmask 523712
    %v3209 = vsel %vm3208, %v3207, %v3202
    %v3210 = vadd.s32 %v3156, 4294967232
    %v3211 = vlaneseq
    %v3212 = vshrl.u32 %v3211, 7
    %v3213 = vsub.s32 %v3210, %v3212
    %v3214 = vrot.slane %v3106, %v3213
    %vm3215 = vcmask 589312
    %v3216 = vsel %vm3215, %v3214, %v3209
    %v3217 = vadd.s32 %v3156, 4294967224
    %v3218 = vlaneseq
    %v3219 = vshrl.u32 %v3218, 7
    %v3220 = vsub.s32 %v3217, %v3219
    %v3221 = vrot.slane %v3109, %v3220
    %vm3222 = vcmask 654912
    %v3223 = vsel %vm3222, %v3221, %v3216
    %v3224 = vadd.s32 %v3156, 4294967216
    %v3225 = vlaneseq
    %v3226 = vshrl.u32 %v3225, 7
    %v3227 = vsub.s32 %v3224, %v3226
    %v3228 = vrot.slane %v3112, %v3227
    %vm3229 = vcmask 720512
    %v3230 = vsel %vm3229, %v3228, %v3223
    %v3231 = vadd.s32 %v3156, 4294967208
    %v3232 = vlaneseq
    %v3233 = vshrl.u32 %v3232, 7
    %v3234 = vsub.s32 %v3231, %v3233
    %v3235 = vrot.slane %v3115, %v3234
    %vm3236 = vcmask 786112
    %v3237 = vsel %vm3236, %v3235, %v3230
    %v3238 = vadd.s32 %v3156, 4294967200
    %v3239 = vlaneseq
    %v3240 = vshrl.u32 %v3239, 7
    %v3241 = vsub.s32 %v3238, %v3240
    %v3242 = vrot.slane %v3118, %v3241
    %vm3243 = vcmask 851712
    %v3244 = vsel %vm3243, %v3242, %v3237
    %v3245 = vadd.s32 %v3156, 4294967192
    %v3246 = vlaneseq
    %v3247 = vshrl.u32 %v3246, 7
    %v3248 = vsub.s32 %v3245, %v3247
    %v3249 = vrot.slane %v3121, %v3248
    %vm3250 = vcmask 917312
    %v3251 = vsel %vm3250, %v3249, %v3244
    %v3252 = vadd.s32 %v3156, 4294967184
    %v3253 = vlaneseq
    %v3254 = vshrl.u32 %v3253, 7
    %v3255 = vsub.s32 %v3252, %v3254
    %v3256 = vrot.slane %v3124, %v3255
    %vm3257 = vcmask 982912
    %v3258 = vsel %vm3257, %v3256, %v3251
    %v3259 = vadd.s32 %v3156, 4294967176
    %v3260 = vlaneseq
    %v3261 = vshrl.u32 %v3260, 7
    %v3262 = vsub.s32 %v3259, %v3261
    %v3263 = vrot.slane %v3127, %v3262
    %vm3264 = vcmask 1048512
    %v3265 = vsel %vm3264, %v3263, %v3258
    %v3266 = vlaneseq
    %v3267 = vshrl.u32 %v3266, 7
    %v3268 = vsub.s32 %v3156, %v3267
    %v3269 = vrot.slane %v3130, %v3268
    %v3270 = vlaneseq
    %v3271 = vshrl.u32 %v3270, 7
    %v3272 = vsub.s32 %v3161, %v3271
    %v3273 = vrot.slane %v3133, %v3272
    %v3274 = vsel %vm3166, %v3273, %v3269
    %v3275 = vlaneseq
    %v3276 = vshrl.u32 %v3275, 7
    %v3277 = vsub.s32 %v3168, %v3276
    %v3278 = vrot.slane %v3136, %v3277
    %v3279 = vsel %vm3173, %v3278, %v3274
    %v3280 = vlaneseq
    %v3281 = vshrl.u32 %v3280, 7
    %v3282 = vsub.s32 %v3175, %v3281
    %v3283 = vrot.slane %v3139, %v3282
    %v3284 = vsel %vm3180, %v3283, %v3279
    %v3285 = vlaneseq
    %v3286 = vshrl.u32 %v3285, 7
    %v3287 = vsub.s32 %v3182, %v3286
    %v3288 = vrot.slane %v3142, %v3287
    %v3289 = vsel %vm3187, %v3288, %v3284
    %v3290 = vlaneseq
    %v3291 = vshrl.u32 %v3290, 7
    %v3292 = vsub.s32 %v3189, %v3291
    %v3293 = vrot.slane %v3145, %v3292
    %v3294 = vsel %vm3194, %v3293, %v3289
    %v3295 = vlaneseq
    %v3296 = vshrl.u32 %v3295, 7
    %v3297 = vsub.s32 %v3196, %v3296
    %v3298 = vrot.slane %v3148, %v3297
    %v3299 = vsel %vm3201, %v3298, %v3294
    %v3300 = vlaneseq
    %v3301 = vshrl.u32 %v3300, 7
    %v3302 = vsub.s32 %v3203, %v3301
    %v3303 = vrot.slane %v3151, %v3302
    %v3304 = vsel %vm3208, %v3303, %v3299
    %v3305 = vlaneseq
    %v3306 = vshrl.u32 %v3305, 7
    %v3307 = vsub.s32 %v3210, %v3306
    %v3308 = vrot.slane %v3154, %v3307
    %v3309 = vsel %vm3215, %v3308, %v3304
    %v3310 = vcombine.low %v3265, %v3309
    %v3312 = vunpack.c.l.s4 1966171168
    %v3313 = vunpack.c.0.s8 %v3312
    %v3314 = vlaneseq
    %v3315 = vshrl.u32 %v3314, 7
    %v3316 = vsub.s32 %v3313, %v3315
    %v3317 = vrot.slane %v3310, %v3316
    %v3319 = vunpack.c.l.s4 1966171168
    %v3320 = vunpack.c.0.s8 %v3319
    %v3321 = vlaneseq
    %v3322 = vshrl.u32 %v3321, 7
    %v3323 = vsub.s32 %v3320, %v3322
    %v3324 = vrot.slane %v3317, %v3323
    %v3326 = vlaneseq
    %vm3327 = vcmp.ge.s32.totalorder %v3326, 0
    %vm3328 = vcmp.lt.s32.totalorder %v3326, 200
    %vm3329 = vmand %vm3327, %vm3328
    %3330 = vst.msk [vmem:[#allocation3] sm:$0x3] %vm3329, %v3324
    // Predicated region
    $region34: #{tpu_custom_call.1} parent=1 // pred_check
      _
    $region35: #{tpu_custom_call.1} parent=1 // pred_check_branch
      %3332 = sbr.rel (0) target = $region37
    $region36: #{tpu_custom_call.1} parent=1 // pred_region
      %s3334 = ssub.s32 32, 32
      %3335 = vsyncadd [#allocation4], %s3334
      %s3337 = sshll.u32 [#allocation3], 4
      %s3338 = int_to_ptr.vmem [resolvable:$true] %s3337
      %3340 = dma.vmem_to_hbm [thread:$0]  %s3338, 32, %s8, [#allocation4]
    $region37: #{tpu_custom_call.1} parent=1 // pred_fallthru
      _
    // Predicated region
    $region38: #{tpu_custom_call.1} parent=1 // pred_check
      _
    $region39: #{tpu_custom_call.1} parent=1 // pred_check_branch
      %3342 = sbr.rel (0) target = $region41
    $region40: #{tpu_custom_call.1} parent=1 // pred_region
      %3343 = dma.done [#allocation4], 32
    $region41: #{tpu_custom_call.1} parent=1 // pred_fallthru
      _
    %3344 = vsyncpa [#allocation4], 1

</llo_original>
